<compile_context>
chip_gen: v7x
topology: tpu7x:2x2x1
jax: 0.10.0
libtpu: 0.0.40
codegen_flags: <defaults>
</compile_context>

<pallas_src>
import numpy as np

import jax
import jax.numpy as jnp
from jax.experimental import pallas as pl
from jax.experimental.pallas import tpu as pltpu


def _round_up(x, m):
    return ((x + m - 1) // m) * m


# ---------------------------------------------------------------------------
# Whole-decode kernel: grid=(T,), one grid step per beam-search timestep.
# ---------------------------------------------------------------------------
def _make_decode_kernel(T, B, H_PAD, V1, K_IN):
    NEG = -jnp.inf

    def kernel(initlp_ref, h0_ref, c0_ref, embed_ref, wxh_ref, b_ref, wo_ref,
               bo_ref,
               stream_ref, lp_ref,
               h_scr, c_scr, xh_scr, sum_scr, ptok_scr, logit_scr, lse_scr):
        t = pl.program_id(0)

        # ---- phase 0: init / recurrence ------------------------------------
        @pl.when(t == 0)
        def _init():
            h_scr[...] = h0_ref[...]
            c_scr[...] = c0_ref[...]
            sum_scr[...] = jnp.zeros_like(sum_scr)
            # t == 0 uses the externally supplied log-probs; lse = 0 so that
            # "score - lse" below already is a log-prob.
            logit_scr[...] = initlp_ref[...]
            lse_scr[...] = jnp.zeros_like(lse_scr)

        @pl.when(t > 0)
        def _recurrence():
            colv0 = jax.lax.broadcasted_iota(jnp.int32, (B, V1), 1)
            # xh_scr (bf16) was packed at the end of the previous step:
            #   [:, :H_PAD]        embedding of the just-emitted token
            #   [:, H_PAD:2*H_PAD] parent-reordered hidden state
            pre = jnp.dot(xh_scr[...], wxh_ref[...],
                          preferred_element_type=jnp.float32) + b_ref[...]
            h_t = jnp.tanh(pre)
            h_scr[...] = h_t
            logits = jnp.dot(h_t.astype(jnp.bfloat16), wo_ref[...],
                             preferred_element_type=jnp.float32) + bo_ref[...]
            # log-softmax normalizer on the raw logits (as in the reference,
            # which normalizes inside get_logprobs_state before the scatter).
            m = jnp.max(logits, axis=-1, keepdims=True)
            lse = jnp.log(jnp.sum(jnp.exp(logits - m), axis=-1,
                                  keepdims=True)) + m
            # decoding_constraint: -inf at the token emitted at t-1 (per beam).
            logits = jnp.where(colv0 == ptok_scr[...], NEG, logits)
            logit_scr[...] = logits
            lse_scr[...] = lse

        # ---- phase 1: UNK suppression + per-beam top-K ----------------------
        colv = jax.lax.broadcasted_iota(jnp.int32, (B, V1), 1)
        sc = logit_scr[...]
        sc = jnp.where(colv == V1 - 1, sc - 1000.0, sc)     # suppress UNK column
        lse = lse_scr[...]

        # Debug / validation output only: full adjusted log-prob plane.
        lp_ref[...] = (sc - lse).reshape(1, B, V1)

        K = B                                   # cols = min(beam_size, V1)
        work = sc
        vals_list, idx_list = [], []
        for _ in range(K):                      # small, unrolled per-row top-K
            mk = jnp.max(work, axis=-1, keepdims=True)                    # [B,1]
            ik = jnp.min(jnp.where(work == mk, colv, V1), axis=-1,
                         keepdims=True)
            vals_list.append(mk)
            idx_list.append(ik)
            work = jnp.where(colv == ik, NEG, work)
        vals = jnp.concatenate(vals_list, axis=1)          # [B,K] masked logits
        idxs = jnp.concatenate(idx_list, axis=1)           # [B,K] token ids
        rloc = vals - lse                                   # [B,K] local log-probs

        # ---- phase 2: cross-beam candidate selection (top-B of B*K) --------
        rowq = jax.lax.broadcasted_iota(jnp.int32, (B, K), 0)
        colc = jax.lax.broadcasted_iota(jnp.int32, (B, K), 1)
        lin = colc * B + rowq          # reference candidate-list order (c-major)
        cand = sum_scr[...] + rloc
        # t == 0: the reference only considers row 0 (rows = 1).
        cand = jnp.where(jnp.logical_and(t == 0, rowq > 0), NEG, cand)

        def _pick(hit, arr, fill):
            v = jnp.where(hit, arr, fill)
            v = jnp.max(v, axis=1, keepdims=True)
            return jnp.max(v, axis=0, keepdims=True)       # [1,1]

        q_list, tok_list, r_list, p_list = [], [], [], []
        work2 = cand
        for _ in range(B):
            mall = jnp.max(jnp.max(work2, axis=1, keepdims=True),
                           axis=0, keepdims=True)           # [1,1] best p
            sel = jnp.where(work2 == mall, lin, B * K)
            sel = jnp.min(jnp.min(sel, axis=1, keepdims=True),
                          axis=0, keepdims=True)             # stable tie-break
            hit = lin == sel
            q_list.append(_pick(hit, rowq, -1))
            tok_list.append(_pick(hit, idxs, -1))
            r_list.append(_pick(hit, rloc, NEG))
            p_list.append(mall)
            work2 = jnp.where(hit, NEG, work2)

        par_col = jnp.concatenate(q_list, axis=0)     # [B,1] i32 parents
        tok_col = jnp.concatenate(tok_list, axis=0)   # [B,1] i32 tokens
        r_col = jnp.concatenate(r_list, axis=0)       # [B,1] f32 local logp
        p_col = jnp.concatenate(p_list, axis=0)       # [B,1] f32 cumulative p

        # ---- phase 3: stream tiny per-step results + carry beam sums -------
        row = jnp.concatenate([par_col.astype(jnp.float32),
                               tok_col.astype(jnp.float32),
                               r_col, p_col], axis=1)                 # [B,4]
        stream_ref[...] = row.reshape(1, B, 4)

        done = jnp.logical_or(tok_col == 0, t == T - 1)
        sum_scr[...] = jnp.where(done, -1000.0, p_col)   # done-beam suppression
        ptok_scr[...] = tok_col

        # ---- phase 4: prepare next step (one-hot MXU reorder + gather) -----
        @pl.when(t + 1 < T)
        def _prep_next():
            beam_iota = jax.lax.broadcasted_iota(jnp.int32, (B, B), 1)
            par_oh = (par_col == beam_iota).astype(jnp.float32)        # [B,B]
            h_re = jnp.dot(par_oh, h_scr[...],
                           preferred_element_type=jnp.float32)
            c_scr[...] = jnp.dot(par_oh, c_scr[...],
                                 preferred_element_type=jnp.float32)
            tok_oh = (tok_col == colv).astype(jnp.bfloat16)            # [B,V1]
            emb = jnp.dot(tok_oh, embed_ref[...],
                          preferred_element_type=jnp.float32)
            xh_scr[:, 0:H_PAD] = emb.astype(jnp.bfloat16)
            xh_scr[:, H_PAD:K_IN] = h_re.astype(jnp.bfloat16)

    return kernel


def _build_decode(T, B, H_PAD, V1, K_IN):
    assert V1 >= B, "vocab_size + 1 must be >= beam size"
    kernel = _make_decode_kernel(T, B, H_PAD, V1, K_IN)

    def cmap(t):              # constant index map -> block DMA'd once, kept
        return (0, 0)

    grid_spec = pltpu.PrefetchScalarGridSpec(
        num_scalar_prefetch=0,
        grid=(T,),
        in_specs=[
            pl.BlockSpec((B, V1), cmap),        # init_logprobs (f32)
            pl.BlockSpec((B, H_PAD), cmap),     # h0 (f32)
            pl.BlockSpec((B, H_PAD), cmap),     # c0 (f32)
            pl.BlockSpec((V1, H_PAD), cmap),    # embed (bf16)
            pl.BlockSpec((K_IN, H_PAD), cmap),  # wxh (bf16)
            pl.BlockSpec((1, H_PAD), cmap),     # b (f32)
            pl.BlockSpec((H_PAD, V1), cmap),    # wo (bf16)
            pl.BlockSpec((1, V1), cmap),        # bo (f32)
        ],
        out_specs=(
            pl.BlockSpec((1, B, 4), lambda t: (t, 0, 0)),    # selection stream
            pl.BlockSpec((1, B, V1), lambda t: (t, 0, 0)),   # debug logp plane
        ),
        scratch_shapes=[
            pltpu.VMEM((B, H_PAD), jnp.float32),   # hidden state
            pltpu.VMEM((B, H_PAD), jnp.float32),   # cell state (reordered only)
            pltpu.VMEM((B, K_IN), jnp.bfloat16),   # packed [emb | h] for next step
            pltpu.VMEM((B, 1), jnp.float32),       # beam_logprobs_sum
            pltpu.VMEM((B, 1), jnp.int32),         # previous tokens (constraint)
            pltpu.VMEM((B, V1), jnp.float32),      # per-step scores
            pltpu.VMEM((B, 1), jnp.float32),       # per-step lse
        ],
    )

    # Explicit VMEM budget (review item): weights + activations + scratch with
    # generous headroom for layout padding / pipelining buffers.
    f32, bf16, i32 = 4, 2, 4
    need = (B * V1 * f32 + 2 * B * H_PAD * f32                      # activations
            + V1 * H_PAD * bf16 + K_IN * H_PAD * bf16               # embed, wxh
            + H_PAD * f32 + H_PAD * V1 * bf16 + V1 * f32            # b, wo, bo
            + B * 4 * f32 + B * V1 * f32                            # outputs
            + 2 * B * H_PAD * f32 + B * K_IN * bf16                 # scratch
            + B * V1 * f32 + 2 * B * f32 + B * i32)
    vmem_limit = int(min(100 * 2 ** 20, max(4 * need, 4 * 2 ** 20)))

    return jax.jit(pl.pallas_call(
        kernel,
        out_shape=(jax.ShapeDtypeStruct((T, B, 4), jnp.float32),
                   jax.ShapeDtypeStruct((T, B, V1), jnp.float32)),
        grid_spec=grid_spec,
        compiler_params=pltpu.CompilerParams(
            dimension_semantics=("arbitrary",),
            vmem_limit_bytes=vmem_limit),
    ))


# ---------------------------------------------------------------------------
# CaptionModel equivalent
# ---------------------------------------------------------------------------
class CaptionModelPallas:
    """Pallas-TPU port of the CaptionModel base class (forward dispatcher +
    beam_search).  The base class defines no decoder, so a synthetic
    single-layer tanh-RNN + output projection stands in for
    get_logprobs_state."""

    def __init__(self, seq_length, vocab_size, rnn_size, key):
        self.seq_length = seq_length
        self.vocab_size = vocab_size
        self.rnn_size = rnn_size
        self.V1 = vocab_size + 1
        self.H_PAD = max(128, _round_up(rnn_size, 128))
        self.K_IN = 2 * self.H_PAD
        # TODO(synk): for rnn_size <= 64 the recurrence contraction could be
        # packed into one 128-lane slot (emb | roll(h)) halving the MXU
        # K-steps; kept at 2*H_PAD for simplicity.
        R, RP, V1 = rnn_size, self.H_PAD, self.V1
        ks = jax.random.split(key, 4)

        def init(k, shape, scale=0.1):
            return (scale * jax.random.normal(k, shape)).astype(jnp.float32)

        embed = jnp.zeros((V1, RP), jnp.float32).at[:, :R].set(init(ks[0], (V1, R)))
        wxh = jnp.zeros((2 * RP, RP), jnp.float32)
        wxh = wxh.at[:R, :R].set(init(ks[1], (R, R)))            # Wx block
        wxh = wxh.at[RP:RP + R, :R].set(init(ks[2], (R, R)))     # Wh block
        wo = jnp.zeros((RP, V1), jnp.float32).at[:R, :].set(init(ks[3], (R, V1)))
        # All matmul operands stored in bf16 (f32 accumulation in-kernel).
        self.embed = embed.astype(jnp.bfloat16)
        self.wxh = wxh.astype(jnp.bfloat16)
        self.wo = wo.astype(jnp.bfloat16)
        self.b = jnp.zeros((1, RP), jnp.float32)
        self.bo = jnp.zeros((1, V1), jnp.float32)
        self._decode_cache = {}
        # TODO(synk): at realistic vocab sizes keep the embedding in HBM and
        # DMA-gather only the bdash needed rows per step (VMEM budget on v7x);
        # at this toy size it is VMEM-resident for the whole decode and rows
        # are gathered with a one-hot MXU matmul.
        # TODO(synk): batching beams of several sentences (and a 2-TensorCore
        # split on v7x) is needed before the MXU becomes the limiter.

    # ---- forward() dispatcher, same semantics as the PyTorch base class ----
    def forward(self, *args, **kwargs):
        mode = kwargs.get('mode', 'forward')
        if 'mode' in kwargs:
            del kwargs['mode']
        return getattr(self, '_' + mode)(*args, **kwargs)

    def _beam_search(self, *args, **kwargs):
        return self.beam_search(*args, **kwargs)

    def _get_decode(self, bdash):
        if bdash not in self._decode_cache:
            self._decode_cache[bdash] = _build_decode(
                self.seq_length, bdash, self.H_PAD, self.V1, self.K_IN)
        return self._decode_cache[bdash]

    def decode_device(self, bdash, init_state, init_logprobs):
        """Runs the full beam-search decode as a single pallas_call."""
        fn = self._get_decode(bdash)
        h0 = jnp.asarray(init_state[0], jnp.float32)[0][:bdash]
        c0 = jnp.asarray(init_state[1], jnp.float32)[0][:bdash]
        hp = jnp.zeros((bdash, self.H_PAD), jnp.float32).at[:, :h0.shape[-1]].set(h0)
        cp = jnp.zeros((bdash, self.H_PAD), jnp.float32).at[:, :c0.shape[-1]].set(c0)
        lp = jnp.asarray(init_logprobs, jnp.float32)[:bdash]
        return fn(lp, hp, cp, self.embed, self.wxh, self.b, self.wo, self.bo)

    # ---- beam_search: device hot loop + one-shot host bookkeeping ----------
    def beam_search(self, beam_size, init_state, init_logprobs, *args, **kwargs):
        # group_size = 1, diversity_lambda = 0.5 (structural no-op),
        # decoding_constraint = 1, max_ppl = 0 -- the reference's constants.
        group_size = 1
        max_ppl = 0
        bdash = beam_size // group_size
        T = self.seq_length
        # TODO(synk): *args (fc/att features) are accepted but unused by the
        # synthetic decoder (the base class never defines get_logprobs_state).

        stream, _ = self.decode_device(bdash, init_state, init_logprobs)
        stream = np.asarray(jax.device_get(stream))       # single tiny D2H copy
        parents = stream[:, :, 0].astype(np.int64)
        tokens = stream[:, :, 1].astype(np.int64)
        rloc = stream[:, :, 2].astype(np.float32)
        psum = stream[:, :, 3].astype(np.float32)

        beam_seq = np.zeros((T, bdash), dtype=np.int64)
        beam_seq_logprobs = np.zeros((T, bdash), dtype=np.float32)
        done_beams = []
        for t in range(T):
            if t >= 1:
                beam_seq[:t] = beam_seq[:t][:, parents[t]]
                beam_seq_logprobs[:t] = beam_seq_logprobs[:t][:, parents[t]]
            beam_seq[t] = tokens[t]
            beam_seq_logprobs[t] = rloc[t]
            for vix in range(bdash):
                if beam_seq[t, vix] == 0 or t == T - 1:
                    final_beam = {'seq': beam_seq[:, vix].copy(),
                                  'logps': beam_seq_logprobs[:, vix].copy(),
                                  'unaug_p': float(beam_seq_logprobs[:, vix].sum()),
                                  'p': float(psum[t, vix])}
                    if max_ppl:
                        final_beam['p'] = final_beam['p'] / (t + 1)
                    done_beams.append(final_beam)
        done_beams = sorted(done_beams, key=lambda x: -x['p'])[:bdash]
        return done_beams


if __name__ == "__main__":
    beam_size = 4
    rnn_size = 32
    vocab_size = 127            # vocab_size + 1 = 128 (lane aligned)
    seq_length = 8
    num_layers = 1

    key = jax.random.PRNGKey(0)
    model = CaptionModelPallas(seq_length, vocab_size, rnn_size, key)

    k1, k2, k3 = jax.random.split(jax.random.PRNGKey(0), 3)
    h0 = 0.1 * jax.random.normal(k1, (num_layers, beam_size, rnn_size), jnp.float32)
    c0 = 0.1 * jax.random.normal(k2, (num_layers, beam_size, rnn_size), jnp.float32)
    logits0 = jax.random.normal(k3, (beam_size, vocab_size + 1), jnp.float32)
    init_logprobs = jax.nn.log_softmax(logits0, axis=-1)

    B, T, V1 = beam_size, seq_length, vocab_size + 1

    # ---- run the fused whole-decode kernel once and block on it ----
    stream_dev, planes_dev = model.decode_device(B, (h0, c0), init_logprobs)
    jax.block_until_ready((stream_dev, planes_dev))
    stream = np.asarray(stream_dev)
    planes = np.asarray(planes_dev)
    parents = stream[:, :, 0].astype(np.int32)
    tokens = stream[:, :, 1].astype(np.int32)
    rloc = stream[:, :, 2]
    psum = stream[:, :, 3]

    # ---- check 1: t = 0 selection (exact, no matmul involved) ----
    lp0 = np.asarray(init_logprobs, np.float32).copy()
    lp0[:, -1] -= 1000.0
    order0 = np.argsort(-lp0[0], kind='stable')[:B].astype(np.int32)
    np.testing.assert_array_equal(tokens[0], order0)
    np.testing.assert_array_equal(parents[0], np.zeros(B, np.int32))
    np.testing.assert_allclose(rloc[0], lp0[0, order0], rtol=1e-5, atol=1e-5)
    np.testing.assert_allclose(psum[0], lp0[0, order0], rtol=1e-5, atol=1e-5)
    np.testing.assert_allclose(planes[0], lp0, rtol=1e-5, atol=1e-5)

    # ---- check 2: step-1 decoder math vs plain jnp (bf16-matched) ----
    hp0 = np.zeros((B, model.H_PAD), np.float32)
    hp0[:, :rnn_size] = np.asarray(h0[0], np.float32)
    emb_f32 = np.asarray(model.embed.astype(jnp.float32))
    x1 = emb_f32[tokens[0]]
    h_in = hp0[parents[0]]
    xh1 = np.concatenate([x1, h_in], axis=1)
    pre = np.asarray(jnp.dot(jnp.asarray(xh1).astype(jnp.bfloat16), model.wxh,
                             preferred_element_type=jnp.float32)) + np.asarray(model.b)
    h1 = np.tanh(pre)
    logits1 = np.asarray(jnp.dot(jnp.asarray(h1).astype(jnp.bfloat16), model.wo,
                                 preferred_element_type=jnp.float32)) + np.asarray(model.bo)
    m1 = logits1.max(axis=-1, keepdims=True)
    lse1 = np.log(np.exp(logits1 - m1).sum(axis=-1, keepdims=True)) + m1
    lp1 = (logits1 - lse1).astype(np.float32)
    lp1[np.arange(B), tokens[0]] = -np.inf
    lp1[:, -1] -= 1000.0
    np.testing.assert_allclose(planes[1], lp1, rtol=1e-2, atol=1e-2)

    # ---- check 3: replay the reference beam_step/bookkeeping on the kernel's
    #      own per-step log-prob planes and compare the selection stream ----
    rep_par = np.zeros((T, B), np.int32)
    rep_tok = np.zeros((T, B), np.int32)
    rep_r = np.zeros((T, B), np.float32)
    rep_p = np.zeros((T, B), np.float32)
    sums = np.zeros(B, np.float32)
    for t in range(T):
        lpt = planes[t]
        rows = B if t > 0 else 1
        cols = min(B, V1)
        order = [np.argsort(-lpt[q], kind='stable') for q in range(rows)]
        cands = []
        for c in range(cols):
            for q in range(rows):
                r = np.float32(lpt[q, order[q][c]])
                cands.append({'q': q, 'c': int(order[q][c]), 'r': r,
                              'p': np.float32(sums[q] + r)})
        cands = sorted(cands, key=lambda x: -x['p'])
        for vix in range(B):
            v = cands[vix]
            rep_par[t, vix] = v['q']
            rep_tok[t, vix] = v['c']
            rep_r[t, vix] = v['r']
            rep_p[t, vix] = v['p']
            sums[vix] = v['p']
        for vix in range(B):
            if rep_tok[t, vix] == 0 or t == T - 1:
                sums[vix] = np.float32(-1000.0)
    np.testing.assert_array_equal(tokens, rep_tok)
    np.testing.assert_array_equal(parents, rep_par)
    np.testing.assert_allclose(rloc, rep_r, rtol=1e-5, atol=1e-5)
    np.testing.assert_allclose(psum, rep_p, rtol=1e-5, atol=1e-5)

    # ---- full beam_search via the forward() dispatcher (base-class API) ----
    done_beams = model.forward(beam_size, (h0, c0), init_logprobs, mode='beam_search')
    assert len(done_beams) == beam_size
    assert all(b['seq'].shape == (seq_length,) for b in done_beams)
    assert all(b['logps'].shape == (seq_length,) for b in done_beams)
    assert all(np.isfinite(b['p']) for b in done_beams)
    # decoding constraint honored: a beam never repeats its parent's last token
    for t in range(1, T):
        prev = np.array([tokens[t - 1][p] for p in parents[t]])
        assert not np.any(tokens[t] == prev)

    print("KERNEL_OK")
</pallas_src>

<mosaic_0001>
module attributes {stable_mosaic.version = 11 : i64} {
  func.func @kernel(%arg0: i32, %arg1: memref<4x128xf32, #tpu.memory_space<vmem>>, %arg2: memref<4x128xf32, #tpu.memory_space<vmem>>, %arg3: memref<4x128xf32, #tpu.memory_space<vmem>>, %arg4: memref<128x128xbf16, #tpu.memory_space<vmem>>, %arg5: memref<256x128xbf16, #tpu.memory_space<vmem>>, %arg6: memref<1x128xf32, #tpu.memory_space<vmem>>, %arg7: memref<128x128xbf16, #tpu.memory_space<vmem>>, %arg8: memref<1x128xf32, #tpu.memory_space<vmem>>, %arg9: memref<1x4x4xf32, #tpu.memory_space<vmem>>, %arg10: memref<1x4x128xf32, #tpu.memory_space<vmem>>, %arg11: memref<4x128xf32, #tpu.memory_space<vmem>>, %arg12: memref<4x128xf32, #tpu.memory_space<vmem>>, %arg13: memref<4x256xbf16, #tpu.memory_space<vmem>>, %arg14: memref<4x1xf32, #tpu.memory_space<vmem>>, %arg15: memref<4x1xi32, #tpu.memory_space<vmem>>, %arg16: memref<4x128xf32, #tpu.memory_space<vmem>>, %arg17: memref<4x1xf32, #tpu.memory_space<vmem>>) attributes {dimension_semantics = [#tpu.dimension_semantics<arbitrary>], iteration_bounds = array<i64: 8>, scalar_prefetch = 0 : i64, scratch_operands = 7 : i64, tpu.core_type = #tpu.core_type<tc>, window_params = [{pipeline_mode = #tpu.pipeline_mode<synchronous>, transform_indices = @transform_0, window_bounds = array<i64: 4, 128>}, {pipeline_mode = #tpu.pipeline_mode<synchronous>, transform_indices = @transform_1, window_bounds = array<i64: 4, 128>}, {pipeline_mode = #tpu.pipeline_mode<synchronous>, transform_indices = @transform_2, window_bounds = array<i64: 4, 128>}, {pipeline_mode = #tpu.pipeline_mode<synchronous>, transform_indices = @transform_3, window_bounds = array<i64: 128, 128>}, {pipeline_mode = #tpu.pipeline_mode<synchronous>, transform_indices = @transform_4, window_bounds = array<i64: 256, 128>}, {pipeline_mode = #tpu.pipeline_mode<synchronous>, transform_indices = @transform_5, window_bounds = array<i64: 1, 128>}, {pipeline_mode = #tpu.pipeline_mode<synchronous>, transform_indices = @transform_6, window_bounds = array<i64: 128, 128>}, {pipeline_mode = #tpu.pipeline_mode<synchronous>, transform_indices = @transform_7, window_bounds = array<i64: 1, 128>}, {transform_indices = @transform_8, window_bounds = array<i64: 1, 4, 4>}, {transform_indices = @transform_9, window_bounds = array<i64: 1, 4, 128>}]} {
    %c0_i32 = arith.constant 0 : i32
    %0 = arith.cmpi eq, %arg0, %c0_i32 : i32
    %1 = arith.extui %0 : i1 to i32
    %c0_i32_0 = arith.constant 0 : i32
    %2 = arith.cmpi ne, %1, %c0_i32_0 : i32
    scf.if %2 {
      %c0_95 = arith.constant 0 : index
      %c0_96 = arith.constant 0 : index
      %237 = vector.load %arg2[%c0_95, %c0_96] : memref<4x128xf32, #tpu.memory_space<vmem>>, vector<4x128xf32>
      %c0_97 = arith.constant 0 : index
      %c0_98 = arith.constant 0 : index
      %238 = vector.load %arg11[%c0_97, %c0_98] : memref<4x128xf32, #tpu.memory_space<vmem>>, vector<4x128xf32>
      tpu.vector_store %arg11[%c0_97, %c0_98], %237 {strides = array<i32>} : memref<4x128xf32, #tpu.memory_space<vmem>>, vector<4x128xf32>,
      %c0_99 = arith.constant 0 : index
      %c0_100 = arith.constant 0 : index
      %239 = vector.load %arg3[%c0_99, %c0_100] : memref<4x128xf32, #tpu.memory_space<vmem>>, vector<4x128xf32>
      %c0_101 = arith.constant 0 : index
      %c0_102 = arith.constant 0 : index
      %240 = vector.load %arg12[%c0_101, %c0_102] : memref<4x128xf32, #tpu.memory_space<vmem>>, vector<4x128xf32>
      tpu.vector_store %arg12[%c0_101, %c0_102], %239 {strides = array<i32>} : memref<4x128xf32, #tpu.memory_space<vmem>>, vector<4x128xf32>,
      %cst_103 = arith.constant 0.000000e+00 : f32
      %241 = vector.broadcast %cst_103 : f32 to vector<4x1xf32>
      %c0_104 = arith.constant 0 : index
      %c0_105 = arith.constant 0 : index
      %242 = vector.load %arg14[%c0_104, %c0_105] : memref<4x1xf32, #tpu.memory_space<vmem>>, vector<4x1xf32>
      tpu.vector_store %arg14[%c0_104, %c0_105], %241 {strides = array<i32>} : memref<4x1xf32, #tpu.memory_space<vmem>>, vector<4x1xf32>,
      %c0_106 = arith.constant 0 : index
      %c0_107 = arith.constant 0 : index
      %243 = vector.load %arg1[%c0_106, %c0_107] : memref<4x128xf32, #tpu.memory_space<vmem>>, vector<4x128xf32>
      %c0_108 = arith.constant 0 : index
      %c0_109 = arith.constant 0 : index
      %244 = vector.load %arg16[%c0_108, %c0_109] : memref<4x128xf32, #tpu.memory_space<vmem>>, vector<4x128xf32>
      tpu.vector_store %arg16[%c0_108, %c0_109], %243 {strides = array<i32>} : memref<4x128xf32, #tpu.memory_space<vmem>>, vector<4x128xf32>,
      %cst_110 = arith.constant 0.000000e+00 : f32
      %245 = vector.broadcast %cst_110 : f32 to vector<4x1xf32>
      %c0_111 = arith.constant 0 : index
      %c0_112 = arith.constant 0 : index
      %246 = vector.load %arg17[%c0_111, %c0_112] : memref<4x1xf32, #tpu.memory_space<vmem>>, vector<4x1xf32>
      tpu.vector_store %arg17[%c0_111, %c0_112], %245 {strides = array<i32>} : memref<4x1xf32, #tpu.memory_space<vmem>>, vector<4x1xf32>,
    } else {
    }
    %c0_i32_1 = arith.constant 0 : i32
    %3 = arith.cmpi sgt, %arg0, %c0_i32_1 : i32
    %4 = arith.extui %3 : i1 to i32
    %c0_i32_2 = arith.constant 0 : i32
    %5 = arith.cmpi ne, %4, %c0_i32_2 : i32
    scf.if %5 {
      %237 = tpu.iota {dimensions = array<i32: 1>} : vector<4x128xi32>
      %c0_95 = arith.constant 0 : index
      %c0_96 = arith.constant 0 : index
      %238 = vector.load %arg13[%c0_95, %c0_96] : memref<4x256xbf16, #tpu.memory_space<vmem>>, vector<4x256xbf16>
      %c0_97 = arith.constant 0 : index
      %c0_98 = arith.constant 0 : index
      %239 = vector.load %arg5[%c0_97, %c0_98] : memref<256x128xbf16, #tpu.memory_space<vmem>>, vector<256x128xbf16>
      %cst_99 = arith.constant dense<0.000000e+00> : vector<4x128xf32>
      %240 = tpu.matmul %238, %239, %cst_99 {dimension_numbers = #tpu.dot_dimension_numbers<[1], [0], [0], [1], [0, 0, 1, 1], [], []>} : vector<4x256xbf16>, vector<256x128xbf16>, vector<4x128xf32> -> vector<4x128xf32>
      %c0_100 = arith.constant 0 : index
      %c0_101 = arith.constant 0 : index
      %241 = vector.load %arg6[%c0_100, %c0_101] : memref<1x128xf32, #tpu.memory_space<vmem>>, vector<1x128xf32>
      %242 = vector.broadcast %241 : vector<1x128xf32> to vector<4x128xf32>
      %243 = arith.addf %240, %242 : vector<4x128xf32>
      %244 = math.tanh %243 : vector<4x128xf32>
      %c0_102 = arith.constant 0 : index
      %c0_103 = arith.constant 0 : index
      %245 = vector.load %arg11[%c0_102, %c0_103] : memref<4x128xf32, #tpu.memory_space<vmem>>, vector<4x128xf32>
      tpu.vector_store %arg11[%c0_102, %c0_103], %244 {strides = array<i32>} : memref<4x128xf32, #tpu.memory_space<vmem>>, vector<4x128xf32>,
      %246 = arith.truncf %244 : vector<4x128xf32> to vector<4x128xbf16>
      %c0_104 = arith.constant 0 : index
      %c0_105 = arith.constant 0 : index
      %247 = vector.load %arg7[%c0_104, %c0_105] : memref<128x128xbf16, #tpu.memory_space<vmem>>, vector<128x128xbf16>
      %cst_106 = arith.constant dense<0.000000e+00> : vector<4x128xf32>
      %248 = tpu.matmul %246, %247, %cst_106 {dimension_numbers = #tpu.dot_dimension_numbers<[1], [0], [0], [1], [0, 0, 1, 1], [], []>} : vector<4x128xbf16>, vector<128x128xbf16>, vector<4x128xf32> -> vector<4x128xf32>
      %c0_107 = arith.constant 0 : index
      %c0_108 = arith.constant 0 : index
      %249 = vector.load %arg8[%c0_107, %c0_108] : memref<1x128xf32, #tpu.memory_space<vmem>>, vector<1x128xf32>
      %250 = vector.broadcast %249 : vector<1x128xf32> to vector<4x128xf32>
      %251 = arith.addf %248, %250 : vector<4x128xf32>
      %cst_109 = arith.constant dense<0xFF800000> : vector<4xf32>
      %252 = vector.multi_reduction <maximumf>, %251, %cst_109 [1] : vector<4x128xf32> to vector<4xf32>
      %253 = vector.shape_cast %252 : vector<4xf32> to vector<4x1xf32>
      %254 = vector.broadcast %253 : vector<4x1xf32> to vector<4x128xf32>
      %255 = arith.subf %251, %254 : vector<4x128xf32>
      %256 = math.exp %255 : vector<4x128xf32>
      %cst_110 = arith.constant dense<0.000000e+00> : vector<4xf32>
      %257 = vector.multi_reduction <add>, %256, %cst_110 [1] : vector<4x128xf32> to vector<4xf32>
      %258 = vector.shape_cast %257 : vector<4xf32> to vector<4x1xf32>
      %259 = math.log %258 : vector<4x1xf32>
      %260 = arith.addf %259, %253 : vector<4x1xf32>
      %c0_111 = arith.constant 0 : index
      %c0_112 = arith.constant 0 : index
      %261 = vector.load %arg15[%c0_111, %c0_112] : memref<4x1xi32, #tpu.memory_space<vmem>>, vector<4x1xi32>
      %262 = vector.broadcast %261 : vector<4x1xi32> to vector<4x128xi32>
      %263 = arith.cmpi eq, %237, %262 : vector<4x128xi32>
      %cst_113 = arith.constant 0xFF800000 : f32
      %264 = vector.broadcast %cst_113 : f32 to vector<4x128xf32>
      %265 = arith.select %263, %264, %251 : vector<4x128xi1>, vector<4x128xf32>
      %c0_114 = arith.constant 0 : index
      %c0_115 = arith.constant 0 : index
      %266 = vector.load %arg16[%c0_114, %c0_115] : memref<4x128xf32, #tpu.memory_space<vmem>>, vector<4x128xf32>
      tpu.vector_store %arg16[%c0_114, %c0_115], %265 {strides = array<i32>} : memref<4x128xf32, #tpu.memory_space<vmem>>, vector<4x128xf32>,
      %c0_116 = arith.constant 0 : index
      %c0_117 = arith.constant 0 : index
      %267 = vector.load %arg17[%c0_116, %c0_117] : memref<4x1xf32, #tpu.memory_space<vmem>>, vector<4x1xf32>
      tpu.vector_store %arg17[%c0_116, %c0_117], %260 {strides = array<i32>} : memref<4x1xf32, #tpu.memory_space<vmem>>, vector<4x1xf32>,
    } else {
    }
    %6 = tpu.iota {dimensions = array<i32: 1>} : vector<4x128xi32>
    %c0 = arith.constant 0 : index
    %c0_3 = arith.constant 0 : index
    %7 = vector.load %arg16[%c0, %c0_3] : memref<4x128xf32, #tpu.memory_space<vmem>>, vector<4x128xf32>
    %c127_i32 = arith.constant 127 : i32
    %8 = vector.broadcast %c127_i32 : i32 to vector<4x128xi32>
    %9 = arith.cmpi eq, %6, %8 : vector<4x128xi32>
    %cst = arith.constant 1.000000e+03 : f32
    %10 = vector.broadcast %cst : f32 to vector<4x128xf32>
    %11 = arith.subf %7, %10 : vector<4x128xf32>
    %12 = arith.select %9, %11, %7 : vector<4x128xi1>, vector<4x128xf32>
    %c0_4 = arith.constant 0 : index
    %c0_5 = arith.constant 0 : index
    %13 = vector.load %arg17[%c0_4, %c0_5] : memref<4x1xf32, #tpu.memory_space<vmem>>, vector<4x1xf32>
    %14 = vector.broadcast %13 : vector<4x1xf32> to vector<4x128xf32>
    %15 = arith.subf %12, %14 : vector<4x128xf32>
    %16 = vector.shape_cast %15 : vector<4x128xf32> to vector<1x4x128xf32>
    %c0_6 = arith.constant 0 : index
    %c0_7 = arith.constant 0 : index
    %c0_8 = arith.constant 0 : index
    %17 = vector.load %arg10[%c0_6, %c0_7, %c0_8] : memref<1x4x128xf32, #tpu.memory_space<vmem>>, vector<1x4x128xf32>
    tpu.vector_store %arg10[%c0_6, %c0_7, %c0_8], %16 {strides = array<i32>} : memref<1x4x128xf32, #tpu.memory_space<vmem>>, vector<1x4x128xf32>,
    %cst_9 = arith.constant dense<0xFF800000> : vector<4xf32>
    %18 = vector.multi_reduction <maximumf>, %12, %cst_9 [1] : vector<4x128xf32> to vector<4xf32>
    %19 = vector.shape_cast %18 : vector<4xf32> to vector<4x1xf32>
    %20 = vector.broadcast %19 : vector<4x1xf32> to vector<4x128xf32>
    %21 = arith.cmpf oeq, %12, %20 : vector<4x128xf32>
    %c128_i32 = arith.constant 128 : i32
    %22 = vector.broadcast %c128_i32 : i32 to vector<4x128xi32>
    %23 = arith.select %21, %6, %22 : vector<4x128xi1>, vector<4x128xi32>
    %cst_10 = arith.constant dense<2147483647> : vector<4xi32>
    %24 = vector.multi_reduction <minsi>, %23, %cst_10 [1] : vector<4x128xi32> to vector<4xi32>
    %25 = vector.shape_cast %24 : vector<4xi32> to vector<4x1xi32>
    %26 = vector.broadcast %25 : vector<4x1xi32> to vector<4x128xi32>
    %27 = arith.cmpi eq, %6, %26 : vector<4x128xi32>
    %cst_11 = arith.constant 0xFF800000 : f32
    %28 = vector.broadcast %cst_11 : f32 to vector<4x128xf32>
    %29 = arith.select %27, %28, %12 : vector<4x128xi1>, vector<4x128xf32>
    %cst_12 = arith.constant dense<0xFF800000> : vector<4xf32>
    %30 = vector.multi_reduction <maximumf>, %29, %cst_12 [1] : vector<4x128xf32> to vector<4xf32>
    %31 = vector.shape_cast %30 : vector<4xf32> to vector<4x1xf32>
    %32 = vector.broadcast %31 : vector<4x1xf32> to vector<4x128xf32>
    %33 = arith.cmpf oeq, %29, %32 : vector<4x128xf32>
    %c128_i32_13 = arith.constant 128 : i32
    %34 = vector.broadcast %c128_i32_13 : i32 to vector<4x128xi32>
    %35 = arith.select %33, %6, %34 : vector<4x128xi1>, vector<4x128xi32>
    %cst_14 = arith.constant dense<2147483647> : vector<4xi32>
    %36 = vector.multi_reduction <minsi>, %35, %cst_14 [1] : vector<4x128xi32> to vector<4xi32>
    %37 = vector.shape_cast %36 : vector<4xi32> to vector<4x1xi32>
    %38 = vector.broadcast %37 : vector<4x1xi32> to vector<4x128xi32>
    %39 = arith.cmpi eq, %6, %38 : vector<4x128xi32>
    %cst_15 = arith.constant 0xFF800000 : f32
    %40 = vector.broadcast %cst_15 : f32 to vector<4x128xf32>
    %41 = arith.select %39, %40, %29 : vector<4x128xi1>, vector<4x128xf32>
    %cst_16 = arith.constant dense<0xFF800000> : vector<4xf32>
    %42 = vector.multi_reduction <maximumf>, %41, %cst_16 [1] : vector<4x128xf32> to vector<4xf32>
    %43 = vector.shape_cast %42 : vector<4xf32> to vector<4x1xf32>
    %44 = vector.broadcast %43 : vector<4x1xf32> to vector<4x128xf32>
    %45 = arith.cmpf oeq, %41, %44 : vector<4x128xf32>
    %c128_i32_17 = arith.constant 128 : i32
    %46 = vector.broadcast %c128_i32_17 : i32 to vector<4x128xi32>
    %47 = arith.select %45, %6, %46 : vector<4x128xi1>, vector<4x128xi32>
    %cst_18 = arith.constant dense<2147483647> : vector<4xi32>
    %48 = vector.multi_reduction <minsi>, %47, %cst_18 [1] : vector<4x128xi32> to vector<4xi32>
    %49 = vector.shape_cast %48 : vector<4xi32> to vector<4x1xi32>
    %50 = vector.broadcast %49 : vector<4x1xi32> to vector<4x128xi32>
    %51 = arith.cmpi eq, %6, %50 : vector<4x128xi32>
    %cst_19 = arith.constant 0xFF800000 : f32
    %52 = vector.broadcast %cst_19 : f32 to vector<4x128xf32>
    %53 = arith.select %51, %52, %41 : vector<4x128xi1>, vector<4x128xf32>
    %cst_20 = arith.constant dense<0xFF800000> : vector<4xf32>
    %54 = vector.multi_reduction <maximumf>, %53, %cst_20 [1] : vector<4x128xf32> to vector<4xf32>
    %55 = vector.shape_cast %54 : vector<4xf32> to vector<4x1xf32>
    %56 = vector.broadcast %55 : vector<4x1xf32> to vector<4x128xf32>
    %57 = arith.cmpf oeq, %53, %56 : vector<4x128xf32>
    %c128_i32_21 = arith.constant 128 : i32
    %58 = vector.broadcast %c128_i32_21 : i32 to vector<4x128xi32>
    %59 = arith.select %57, %6, %58 : vector<4x128xi1>, vector<4x128xi32>
    %cst_22 = arith.constant dense<2147483647> : vector<4xi32>
    %60 = vector.multi_reduction <minsi>, %59, %cst_22 [1] : vector<4x128xi32> to vector<4xi32>
    %61 = vector.shape_cast %60 : vector<4xi32> to vector<4x1xi32>
    %62 = tpu.concatenate %19, %31, %43, %55 in 1 : vector<4x1xf32>, vector<4x1xf32>, vector<4x1xf32>, vector<4x1xf32> -> vector<4x4xf32>
    %63 = tpu.concatenate %25, %37, %49, %61 in 1 : vector<4x1xi32>, vector<4x1xi32>, vector<4x1xi32>, vector<4x1xi32> -> vector<4x4xi32>
    %64 = vector.broadcast %13 : vector<4x1xf32> to vector<4x4xf32>
    %65 = arith.subf %62, %64 : vector<4x4xf32>
    %66 = tpu.iota {dimensions = array<i32: 0>} : vector<4x4xi32>
    %67 = tpu.iota {dimensions = array<i32: 1>} : vector<4x4xi32>
    %c4_i32 = arith.constant 4 : i32
    %68 = vector.broadcast %c4_i32 : i32 to vector<4x4xi32>
    %69 = arith.muli %67, %68 : vector<4x4xi32>
    %70 = arith.addi %69, %66 : vector<4x4xi32>
    %c0_23 = arith.constant 0 : index
    %c0_24 = arith.constant 0 : index
    %71 = vector.load %arg14[%c0_23, %c0_24] : memref<4x1xf32, #tpu.memory_space<vmem>>, vector<4x1xf32>
    %72 = vector.broadcast %71 : vector<4x1xf32> to vector<4x4xf32>
    %73 = arith.addf %72, %65 : vector<4x4xf32>
    %c0_i32_25 = arith.constant 0 : i32
    %74 = arith.cmpi eq, %arg0, %c0_i32_25 : i32
    %c0_i32_26 = arith.constant 0 : i32
    %75 = vector.broadcast %c0_i32_26 : i32 to vector<4x4xi32>
    %76 = arith.cmpi sgt, %66, %75 : vector<4x4xi32>
    %77 = vector.broadcast %74 : i1 to vector<4x4xi1>
    %78 = arith.andi %77, %76 : vector<4x4xi1>
    %cst_27 = arith.constant 0xFF800000 : f32
    %79 = vector.broadcast %cst_27 : f32 to vector<4x4xf32>
    %80 = arith.select %78, %79, %73 : vector<4x4xi1>, vector<4x4xf32>
    %cst_28 = arith.constant dense<0xFF800000> : vector<4xf32>
    %81 = vector.multi_reduction <maximumf>, %80, %cst_28 [1] : vector<4x4xf32> to vector<4xf32>
    %82 = vector.shape_cast %81 : vector<4xf32> to vector<4x1xf32>
    %cst_29 = arith.constant dense<0xFF800000> : vector<1xf32>
    %83 = vector.multi_reduction <maximumf>, %82, %cst_29 [0] : vector<4x1xf32> to vector<1xf32>
    %84 = vector.shape_cast %83 : vector<1xf32> to vector<1x1xf32>
    %85 = vector.broadcast %84 : vector<1x1xf32> to vector<4x4xf32>
    %86 = arith.cmpf oeq, %80, %85 : vector<4x4xf32>
    %c16_i32 = arith.constant 16 : i32
    %87 = vector.broadcast %c16_i32 : i32 to vector<4x4xi32>
    %88 = arith.select %86, %70, %87 : vector<4x4xi1>, vector<4x4xi32>
    %cst_30 = arith.constant dense<2147483647> : vector<4xi32>
    %89 = vector.multi_reduction <minsi>, %88, %cst_30 [1] : vector<4x4xi32> to vector<4xi32>
    %90 = vector.shape_cast %89 : vector<4xi32> to vector<4x1xi32>
    %cst_31 = arith.constant dense<2147483647> : vector<1xi32>
    %91 = vector.multi_reduction <minsi>, %90, %cst_31 [0] : vector<4x1xi32> to vector<1xi32>
    %92 = vector.shape_cast %91 : vector<1xi32> to vector<1x1xi32>
    %93 = vector.broadcast %92 : vector<1x1xi32> to vector<4x4xi32>
    %94 = arith.cmpi eq, %70, %93 : vector<4x4xi32>
    %c-1_i32 = arith.constant -1 : i32
    %95 = vector.broadcast %c-1_i32 : i32 to vector<4x4xi32>
    %96 = arith.select %94, %66, %95 : vector<4x4xi1>, vector<4x4xi32>
    %cst_32 = arith.constant dense<-2147483648> : vector<4xi32>
    %97 = vector.multi_reduction <maxsi>, %96, %cst_32 [1] : vector<4x4xi32> to vector<4xi32>
    %98 = vector.shape_cast %97 : vector<4xi32> to vector<4x1xi32>
    %cst_33 = arith.constant dense<-2147483648> : vector<1xi32>
    %99 = vector.multi_reduction <maxsi>, %98, %cst_33 [0] : vector<4x1xi32> to vector<1xi32>
    %100 = vector.shape_cast %99 : vector<1xi32> to vector<1x1xi32>
    %c-1_i32_34 = arith.constant -1 : i32
    %101 = vector.broadcast %c-1_i32_34 : i32 to vector<4x4xi32>
    %102 = arith.select %94, %63, %101 : vector<4x4xi1>, vector<4x4xi32>
    %cst_35 = arith.constant dense<-2147483648> : vector<4xi32>
    %103 = vector.multi_reduction <maxsi>, %102, %cst_35 [1] : vector<4x4xi32> to vector<4xi32>
    %104 = vector.shape_cast %103 : vector<4xi32> to vector<4x1xi32>
    %cst_36 = arith.constant dense<-2147483648> : vector<1xi32>
    %105 = vector.multi_reduction <maxsi>, %104, %cst_36 [0] : vector<4x1xi32> to vector<1xi32>
    %106 = vector.shape_cast %105 : vector<1xi32> to vector<1x1xi32>
    %cst_37 = arith.constant 0xFF800000 : f32
    %107 = vector.broadcast %cst_37 : f32 to vector<4x4xf32>
    %108 = arith.select %94, %65, %107 : vector<4x4xi1>, vector<4x4xf32>
    %cst_38 = arith.constant dense<0xFF800000> : vector<4xf32>
    %109 = vector.multi_reduction <maximumf>, %108, %cst_38 [1] : vector<4x4xf32> to vector<4xf32>
    %110 = vector.shape_cast %109 : vector<4xf32> to vector<4x1xf32>
    %cst_39 = arith.constant dense<0xFF800000> : vector<1xf32>
    %111 = vector.multi_reduction <maximumf>, %110, %cst_39 [0] : vector<4x1xf32> to vector<1xf32>
    %112 = vector.shape_cast %111 : vector<1xf32> to vector<1x1xf32>
    %cst_40 = arith.constant 0xFF800000 : f32
    %113 = vector.broadcast %cst_40 : f32 to vector<4x4xf32>
    %114 = arith.select %94, %113, %80 : vector<4x4xi1>, vector<4x4xf32>
    %cst_41 = arith.constant dense<0xFF800000> : vector<4xf32>
    %115 = vector.multi_reduction <maximumf>, %114, %cst_41 [1] : vector<4x4xf32> to vector<4xf32>
    %116 = vector.shape_cast %115 : vector<4xf32> to vector<4x1xf32>
    %cst_42 = arith.constant dense<0xFF800000> : vector<1xf32>
    %117 = vector.multi_reduction <maximumf>, %116, %cst_42 [0] : vector<4x1xf32> to vector<1xf32>
    %118 = vector.shape_cast %117 : vector<1xf32> to vector<1x1xf32>
    %119 = vector.broadcast %118 : vector<1x1xf32> to vector<4x4xf32>
    %120 = arith.cmpf oeq, %114, %119 : vector<4x4xf32>
    %c16_i32_43 = arith.constant 16 : i32
    %121 = vector.broadcast %c16_i32_43 : i32 to vector<4x4xi32>
    %122 = arith.select %120, %70, %121 : vector<4x4xi1>, vector<4x4xi32>
    %cst_44 = arith.constant dense<2147483647> : vector<4xi32>
    %123 = vector.multi_reduction <minsi>, %122, %cst_44 [1] : vector<4x4xi32> to vector<4xi32>
    %124 = vector.shape_cast %123 : vector<4xi32> to vector<4x1xi32>
    %cst_45 = arith.constant dense<2147483647> : vector<1xi32>
    %125 = vector.multi_reduction <minsi>, %124, %cst_45 [0] : vector<4x1xi32> to vector<1xi32>
    %126 = vector.shape_cast %125 : vector<1xi32> to vector<1x1xi32>
    %127 = vector.broadcast %126 : vector<1x1xi32> to vector<4x4xi32>
    %128 = arith.cmpi eq, %70, %127 : vector<4x4xi32>
    %c-1_i32_46 = arith.constant -1 : i32
    %129 = vector.broadcast %c-1_i32_46 : i32 to vector<4x4xi32>
    %130 = arith.select %128, %66, %129 : vector<4x4xi1>, vector<4x4xi32>
    %cst_47 = arith.constant dense<-2147483648> : vector<4xi32>
    %131 = vector.multi_reduction <maxsi>, %130, %cst_47 [1] : vector<4x4xi32> to vector<4xi32>
    %132 = vector.shape_cast %131 : vector<4xi32> to vector<4x1xi32>
    %cst_48 = arith.constant dense<-2147483648> : vector<1xi32>
    %133 = vector.multi_reduction <maxsi>, %132, %cst_48 [0] : vector<4x1xi32> to vector<1xi32>
    %134 = vector.shape_cast %133 : vector<1xi32> to vector<1x1xi32>
    %c-1_i32_49 = arith.constant -1 : i32
    %135 = vector.broadcast %c-1_i32_49 : i32 to vector<4x4xi32>
    %136 = arith.select %128, %63, %135 : vector<4x4xi1>, vector<4x4xi32>
    %cst_50 = arith.constant dense<-2147483648> : vector<4xi32>
    %137 = vector.multi_reduction <maxsi>, %136, %cst_50 [1] : vector<4x4xi32> to vector<4xi32>
    %138 = vector.shape_cast %137 : vector<4xi32> to vector<4x1xi32>
    %cst_51 = arith.constant dense<-2147483648> : vector<1xi32>
    %139 = vector.multi_reduction <maxsi>, %138, %cst_51 [0] : vector<4x1xi32> to vector<1xi32>
    %140 = vector.shape_cast %139 : vector<1xi32> to vector<1x1xi32>
    %cst_52 = arith.constant 0xFF800000 : f32
    %141 = vector.broadcast %cst_52 : f32 to vector<4x4xf32>
    %142 = arith.select %128, %65, %141 : vector<4x4xi1>, vector<4x4xf32>
    %cst_53 = arith.constant dense<0xFF800000> : vector<4xf32>
    %143 = vector.multi_reduction <maximumf>, %142, %cst_53 [1] : vector<4x4xf32> to vector<4xf32>
    %144 = vector.shape_cast %143 : vector<4xf32> to vector<4x1xf32>
    %cst_54 = arith.constant dense<0xFF800000> : vector<1xf32>
    %145 = vector.multi_reduction <maximumf>, %144, %cst_54 [0] : vector<4x1xf32> to vector<1xf32>
    %146 = vector.shape_cast %145 : vector<1xf32> to vector<1x1xf32>
    %cst_55 = arith.constant 0xFF800000 : f32
    %147 = vector.broadcast %cst_55 : f32 to vector<4x4xf32>
    %148 = arith.select %128, %147, %114 : vector<4x4xi1>, vector<4x4xf32>
    %cst_56 = arith.constant dense<0xFF800000> : vector<4xf32>
    %149 = vector.multi_reduction <maximumf>, %148, %cst_56 [1] : vector<4x4xf32> to vector<4xf32>
    %150 = vector.shape_cast %149 : vector<4xf32> to vector<4x1xf32>
    %cst_57 = arith.constant dense<0xFF800000> : vector<1xf32>
    %151 = vector.multi_reduction <maximumf>, %150, %cst_57 [0] : vector<4x1xf32> to vector<1xf32>
    %152 = vector.shape_cast %151 : vector<1xf32> to vector<1x1xf32>
    %153 = vector.broadcast %152 : vector<1x1xf32> to vector<4x4xf32>
    %154 = arith.cmpf oeq, %148, %153 : vector<4x4xf32>
    %c16_i32_58 = arith.constant 16 : i32
    %155 = vector.broadcast %c16_i32_58 : i32 to vector<4x4xi32>
    %156 = arith.select %154, %70, %155 : vector<4x4xi1>, vector<4x4xi32>
    %cst_59 = arith.constant dense<2147483647> : vector<4xi32>
    %157 = vector.multi_reduction <minsi>, %156, %cst_59 [1] : vector<4x4xi32> to vector<4xi32>
    %158 = vector.shape_cast %157 : vector<4xi32> to vector<4x1xi32>
    %cst_60 = arith.constant dense<2147483647> : vector<1xi32>
    %159 = vector.multi_reduction <minsi>, %158, %cst_60 [0] : vector<4x1xi32> to vector<1xi32>
    %160 = vector.shape_cast %159 : vector<1xi32> to vector<1x1xi32>
    %161 = vector.broadcast %160 : vector<1x1xi32> to vector<4x4xi32>
    %162 = arith.cmpi eq, %70, %161 : vector<4x4xi32>
    %c-1_i32_61 = arith.constant -1 : i32
    %163 = vector.broadcast %c-1_i32_61 : i32 to vector<4x4xi32>
    %164 = arith.select %162, %66, %163 : vector<4x4xi1>, vector<4x4xi32>
    %cst_62 = arith.constant dense<-2147483648> : vector<4xi32>
    %165 = vector.multi_reduction <maxsi>, %164, %cst_62 [1] : vector<4x4xi32> to vector<4xi32>
    %166 = vector.shape_cast %165 : vector<4xi32> to vector<4x1xi32>
    %cst_63 = arith.constant dense<-2147483648> : vector<1xi32>
    %167 = vector.multi_reduction <maxsi>, %166, %cst_63 [0] : vector<4x1xi32> to vector<1xi32>
    %168 = vector.shape_cast %167 : vector<1xi32> to vector<1x1xi32>
    %c-1_i32_64 = arith.constant -1 : i32
    %169 = vector.broadcast %c-1_i32_64 : i32 to vector<4x4xi32>
    %170 = arith.select %162, %63, %169 : vector<4x4xi1>, vector<4x4xi32>
    %cst_65 = arith.constant dense<-2147483648> : vector<4xi32>
    %171 = vector.multi_reduction <maxsi>, %170, %cst_65 [1] : vector<4x4xi32> to vector<4xi32>
    %172 = vector.shape_cast %171 : vector<4xi32> to vector<4x1xi32>
    %cst_66 = arith.constant dense<-2147483648> : vector<1xi32>
    %173 = vector.multi_reduction <maxsi>, %172, %cst_66 [0] : vector<4x1xi32> to vector<1xi32>
    %174 = vector.shape_cast %173 : vector<1xi32> to vector<1x1xi32>
    %cst_67 = arith.constant 0xFF800000 : f32
    %175 = vector.broadcast %cst_67 : f32 to vector<4x4xf32>
    %176 = arith.select %162, %65, %175 : vector<4x4xi1>, vector<4x4xf32>
    %cst_68 = arith.constant dense<0xFF800000> : vector<4xf32>
    %177 = vector.multi_reduction <maximumf>, %176, %cst_68 [1] : vector<4x4xf32> to vector<4xf32>
    %178 = vector.shape_cast %177 : vector<4xf32> to vector<4x1xf32>
    %cst_69 = arith.constant dense<0xFF800000> : vector<1xf32>
    %179 = vector.multi_reduction <maximumf>, %178, %cst_69 [0] : vector<4x1xf32> to vector<1xf32>
    %180 = vector.shape_cast %179 : vector<1xf32> to vector<1x1xf32>
    %cst_70 = arith.constant 0xFF800000 : f32
    %181 = vector.broadcast %cst_70 : f32 to vector<4x4xf32>
    %182 = arith.select %162, %181, %148 : vector<4x4xi1>, vector<4x4xf32>
    %cst_71 = arith.constant dense<0xFF800000> : vector<4xf32>
    %183 = vector.multi_reduction <maximumf>, %182, %cst_71 [1] : vector<4x4xf32> to vector<4xf32>
    %184 = vector.shape_cast %183 : vector<4xf32> to vector<4x1xf32>
    %cst_72 = arith.constant dense<0xFF800000> : vector<1xf32>
    %185 = vector.multi_reduction <maximumf>, %184, %cst_72 [0] : vector<4x1xf32> to vector<1xf32>
    %186 = vector.shape_cast %185 : vector<1xf32> to vector<1x1xf32>
    %187 = vector.broadcast %186 : vector<1x1xf32> to vector<4x4xf32>
    %188 = arith.cmpf oeq, %182, %187 : vector<4x4xf32>
    %c16_i32_73 = arith.constant 16 : i32
    %189 = vector.broadcast %c16_i32_73 : i32 to vector<4x4xi32>
    %190 = arith.select %188, %70, %189 : vector<4x4xi1>, vector<4x4xi32>
    %cst_74 = arith.constant dense<2147483647> : vector<4xi32>
    %191 = vector.multi_reduction <minsi>, %190, %cst_74 [1] : vector<4x4xi32> to vector<4xi32>
    %192 = vector.shape_cast %191 : vector<4xi32> to vector<4x1xi32>
    %cst_75 = arith.constant dense<2147483647> : vector<1xi32>
    %193 = vector.multi_reduction <minsi>, %192, %cst_75 [0] : vector<4x1xi32> to vector<1xi32>
    %194 = vector.shape_cast %193 : vector<1xi32> to vector<1x1xi32>
    %195 = vector.broadcast %194 : vector<1x1xi32> to vector<4x4xi32>
    %196 = arith.cmpi eq, %70, %195 : vector<4x4xi32>
    %c-1_i32_76 = arith.constant -1 : i32
    %197 = vector.broadcast %c-1_i32_76 : i32 to vector<4x4xi32>
    %198 = arith.select %196, %66, %197 : vector<4x4xi1>, vector<4x4xi32>
    %cst_77 = arith.constant dense<-2147483648> : vector<4xi32>
    %199 = vector.multi_reduction <maxsi>, %198, %cst_77 [1] : vector<4x4xi32> to vector<4xi32>
    %200 = vector.shape_cast %199 : vector<4xi32> to vector<4x1xi32>
    %cst_78 = arith.constant dense<-2147483648> : vector<1xi32>
    %201 = vector.multi_reduction <maxsi>, %200, %cst_78 [0] : vector<4x1xi32> to vector<1xi32>
    %202 = vector.shape_cast %201 : vector<1xi32> to vector<1x1xi32>
    %c-1_i32_79 = arith.constant -1 : i32
    %203 = vector.broadcast %c-1_i32_79 : i32 to vector<4x4xi32>
    %204 = arith.select %196, %63, %203 : vector<4x4xi1>, vector<4x4xi32>
    %cst_80 = arith.constant dense<-2147483648> : vector<4xi32>
    %205 = vector.multi_reduction <maxsi>, %204, %cst_80 [1] : vector<4x4xi32> to vector<4xi32>
    %206 = vector.shape_cast %205 : vector<4xi32> to vector<4x1xi32>
    %cst_81 = arith.constant dense<-2147483648> : vector<1xi32>
    %207 = vector.multi_reduction <maxsi>, %206, %cst_81 [0] : vector<4x1xi32> to vector<1xi32>
    %208 = vector.shape_cast %207 : vector<1xi32> to vector<1x1xi32>
    %cst_82 = arith.constant 0xFF800000 : f32
    %209 = vector.broadcast %cst_82 : f32 to vector<4x4xf32>
    %210 = arith.select %196, %65, %209 : vector<4x4xi1>, vector<4x4xf32>
    %cst_83 = arith.constant dense<0xFF800000> : vector<4xf32>
    %211 = vector.multi_reduction <maximumf>, %210, %cst_83 [1] : vector<4x4xf32> to vector<4xf32>
    %212 = vector.shape_cast %211 : vector<4xf32> to vector<4x1xf32>
    %cst_84 = arith.constant dense<0xFF800000> : vector<1xf32>
    %213 = vector.multi_reduction <maximumf>, %212, %cst_84 [0] : vector<4x1xf32> to vector<1xf32>
    %214 = vector.shape_cast %213 : vector<1xf32> to vector<1x1xf32>
    %215 = tpu.concatenate %100, %134, %168, %202 in 0 : vector<1x1xi32>, vector<1x1xi32>, vector<1x1xi32>, vector<1x1xi32> -> vector<4x1xi32>
    %216 = tpu.concatenate %106, %140, %174, %208 in 0 : vector<1x1xi32>, vector<1x1xi32>, vector<1x1xi32>, vector<1x1xi32> -> vector<4x1xi32>
    %217 = tpu.concatenate %112, %146, %180, %214 in 0 : vector<1x1xf32>, vector<1x1xf32>, vector<1x1xf32>, vector<1x1xf32> -> vector<4x1xf32>
    %218 = tpu.concatenate %84, %118, %152, %186 in 0 : vector<1x1xf32>, vector<1x1xf32>, vector<1x1xf32>, vector<1x1xf32> -> vector<4x1xf32>
    %219 = arith.sitofp %215 : vector<4x1xi32> to vector<4x1xf32>
    %220 = arith.sitofp %216 : vector<4x1xi32> to vector<4x1xf32>
    %221 = tpu.concatenate %219, %220, %217, %218 in 1 : vector<4x1xf32>, vector<4x1xf32>, vector<4x1xf32>, vector<4x1xf32> -> vector<4x4xf32>
    %222 = vector.shape_cast %221 : vector<4x4xf32> to vector<1x4x4xf32>
    %c0_85 = arith.constant 0 : index
    %c0_86 = arith.constant 0 : index
    %c0_87 = arith.constant 0 : index
    %223 = vector.load %arg9[%c0_85, %c0_86, %c0_87] : memref<1x4x4xf32, #tpu.memory_space<vmem>>, vector<1x4x4xf32>
    tpu.vector_store %arg9[%c0_85, %c0_86, %c0_87], %222 {strides = array<i32>} : memref<1x4x4xf32, #tpu.memory_space<vmem>>, vector<1x4x4xf32>,
    %c0_i32_88 = arith.constant 0 : i32
    %224 = vector.broadcast %c0_i32_88 : i32 to vector<4x1xi32>
    %225 = arith.cmpi eq, %216, %224 : vector<4x1xi32>
    %c7_i32 = arith.constant 7 : i32
    %226 = arith.cmpi eq, %arg0, %c7_i32 : i32
    %227 = vector.broadcast %226 : i1 to vector<4x1xi1>
    %228 = arith.ori %225, %227 : vector<4x1xi1>
    %cst_89 = arith.constant -1.000000e+03 : f32
    %229 = vector.broadcast %cst_89 : f32 to vector<4x1xf32>
    %230 = arith.select %228, %229, %218 : vector<4x1xi1>, vector<4x1xf32>
    %c0_90 = arith.constant 0 : index
    %c0_91 = arith.constant 0 : index
    %231 = vector.load %arg14[%c0_90, %c0_91] : memref<4x1xf32, #tpu.memory_space<vmem>>, vector<4x1xf32>
    tpu.vector_store %arg14[%c0_90, %c0_91], %230 {strides = array<i32>} : memref<4x1xf32, #tpu.memory_space<vmem>>, vector<4x1xf32>,
    %c0_92 = arith.constant 0 : index
    %c0_93 = arith.constant 0 : index
    %232 = vector.load %arg15[%c0_92, %c0_93] : memref<4x1xi32, #tpu.memory_space<vmem>>, vector<4x1xi32>
    tpu.vector_store %arg15[%c0_92, %c0_93], %216 {strides = array<i32>} : memref<4x1xi32, #tpu.memory_space<vmem>>, vector<4x1xi32>,
    %c1_i32 = arith.constant 1 : i32
    %233 = arith.addi %arg0, %c1_i32 : i32
    %c8_i32 = arith.constant 8 : i32
    %234 = arith.cmpi slt, %233, %c8_i32 : i32
    %235 = arith.extui %234 : i1 to i32
    %c0_i32_94 = arith.constant 0 : i32
    %236 = arith.cmpi ne, %235, %c0_i32_94 : i32
    scf.if %236 {
      %237 = tpu.iota {dimensions = array<i32: 1>} : vector<4x4xi32>
      %238 = vector.broadcast %215 : vector<4x1xi32> to vector<4x4xi32>
      %239 = arith.cmpi eq, %238, %237 : vector<4x4xi32>
      %240 = arith.extui %239 : vector<4x4xi1> to vector<4x4xi32>
      %241 = arith.sitofp %240 : vector<4x4xi32> to vector<4x4xf32>
      %c0_95 = arith.constant 0 : index
      %c0_96 = arith.constant 0 : index
      %242 = vector.load %arg11[%c0_95, %c0_96] : memref<4x128xf32, #tpu.memory_space<vmem>>, vector<4x128xf32>
      %cst_97 = arith.constant dense<0.000000e+00> : vector<4x128xf32>
      %243 = tpu.matmul %241, %242, %cst_97 {dimension_numbers = #tpu.dot_dimension_numbers<[1], [0], [0], [1], [0, 0, 1, 1], [], []>} : vector<4x4xf32>, vector<4x128xf32>, vector<4x128xf32> -> vector<4x128xf32>
      %c0_98 = arith.constant 0 : index
      %c0_99 = arith.constant 0 : index
      %244 = vector.load %arg12[%c0_98, %c0_99] : memref<4x128xf32, #tpu.memory_space<vmem>>, vector<4x128xf32>
      %cst_100 = arith.constant dense<0.000000e+00> : vector<4x128xf32>
      %245 = tpu.matmul %241, %244, %cst_100 {dimension_numbers = #tpu.dot_dimension_numbers<[1], [0], [0], [1], [0, 0, 1, 1], [], []>} : vector<4x4xf32>, vector<4x128xf32>, vector<4x128xf32> -> vector<4x128xf32>
      %c0_101 = arith.constant 0 : index
      %c0_102 = arith.constant 0 : index
      %246 = vector.load %arg12[%c0_101, %c0_102] : memref<4x128xf32, #tpu.memory_space<vmem>>, vector<4x128xf32>
      tpu.vector_store %arg12[%c0_101, %c0_102], %245 {strides = array<i32>} : memref<4x128xf32, #tpu.memory_space<vmem>>, vector<4x128xf32>,
      %247 = vector.broadcast %216 : vector<4x1xi32> to vector<4x128xi32>
      %248 = arith.cmpi eq, %247, %6 : vector<4x128xi32>
      %249 = arith.extui %248 : vector<4x128xi1> to vector<4x128xi32>
      %250 = arith.sitofp %249 : vector<4x128xi32> to vector<4x128xf32>
      %251 = arith.truncf %250 : vector<4x128xf32> to vector<4x128xbf16>
      %c0_103 = arith.constant 0 : index
      %c0_104 = arith.constant 0 : index
      %252 = vector.load %arg4[%c0_103, %c0_104] : memref<128x128xbf16, #tpu.memory_space<vmem>>, vector<128x128xbf16>
      %cst_105 = arith.constant dense<0.000000e+00> : vector<4x128xf32>
      %253 = tpu.matmul %251, %252, %cst_105 {dimension_numbers = #tpu.dot_dimension_numbers<[1], [0], [0], [1], [0, 0, 1, 1], [], []>} : vector<4x128xbf16>, vector<128x128xbf16>, vector<4x128xf32> -> vector<4x128xf32>
      %254 = arith.truncf %253 : vector<4x128xf32> to vector<4x128xbf16>
      %c0_106 = arith.constant 0 : index
      %c0_107 = arith.constant 0 : index
      %255 = vector.load %arg13[%c0_106, %c0_107] : memref<4x256xbf16, #tpu.memory_space<vmem>>, vector<4x128xbf16>
      tpu.vector_store %arg13[%c0_106, %c0_107], %254 {strides = array<i32>} : memref<4x256xbf16, #tpu.memory_space<vmem>>, vector<4x128xbf16>,
      %256 = arith.truncf %243 : vector<4x128xf32> to vector<4x128xbf16>
      %c0_108 = arith.constant 0 : index
      %c128 = arith.constant 128 : index
      %257 = vector.load %arg13[%c0_108, %c128] : memref<4x256xbf16, #tpu.memory_space<vmem>>, vector<4x128xbf16>
      tpu.vector_store %arg13[%c0_108, %c128], %256 {strides = array<i32>} : memref<4x256xbf16, #tpu.memory_space<vmem>>, vector<4x128xbf16>,
    } else {
    }
    return
  }
  func.func @transform_0(%arg0: i32) -> (i32, i32) {
    %c0_i32 = arith.constant 0 : i32
    %c0_i32_0 = arith.constant 0 : i32
    %c0_i32_1 = arith.constant 0 : i32
    return %c0_i32, %c0_i32_0 : i32, i32
  }
  func.func @transform_1(%arg0: i32) -> (i32, i32) {
    %c0_i32 = arith.constant 0 : i32
    %c0_i32_0 = arith.constant 0 : i32
    %c0_i32_1 = arith.constant 0 : i32
    return %c0_i32, %c0_i32_0 : i32, i32
  }
  func.func @transform_2(%arg0: i32) -> (i32, i32) {
    %c0_i32 = arith.constant 0 : i32
    %c0_i32_0 = arith.constant 0 : i32
    %c0_i32_1 = arith.constant 0 : i32
    return %c0_i32, %c0_i32_0 : i32, i32
  }
  func.func @transform_3(%arg0: i32) -> (i32, i32) {
    %c0_i32 = arith.constant 0 : i32
    %c0_i32_0 = arith.constant 0 : i32
    %c0_i32_1 = arith.constant 0 : i32
    return %c0_i32, %c0_i32_0 : i32, i32
  }
  func.func @transform_4(%arg0: i32) -> (i32, i32) {
    %c0_i32 = arith.constant 0 : i32
    %c0_i32_0 = arith.constant 0 : i32
    %c0_i32_1 = arith.constant 0 : i32
    return %c0_i32, %c0_i32_0 : i32, i32
  }
  func.func @transform_5(%arg0: i32) -> (i32, i32) {
    %c0_i32 = arith.constant 0 : i32
    %c0_i32_0 = arith.constant 0 : i32
    %c0_i32_1 = arith.constant 0 : i32
    return %c0_i32, %c0_i32_0 : i32, i32
  }
  func.func @transform_6(%arg0: i32) -> (i32, i32) {
    %c0_i32 = arith.constant 0 : i32
    %c0_i32_0 = arith.constant 0 : i32
    %c0_i32_1 = arith.constant 0 : i32
    return %c0_i32, %c0_i32_0 : i32, i32
  }
  func.func @transform_7(%arg0: i32) -> (i32, i32) {
    %c0_i32 = arith.constant 0 : i32
    %c0_i32_0 = arith.constant 0 : i32
    %c0_i32_1 = arith.constant 0 : i32
    return %c0_i32, %c0_i32_0 : i32, i32
  }
  func.func @transform_8(%arg0: i32) -> (i32, i32, i32) {
    %c0_i32 = arith.constant 0 : i32
    %c0_i32_0 = arith.constant 0 : i32
    %c0_i32_1 = arith.constant 0 : i32
    return %arg0, %c0_i32, %c0_i32_0 : i32, i32, i32
  }
  func.func @transform_9(%arg0: i32) -> (i32, i32, i32) {
    %c0_i32 = arith.constant 0 : i32
    %c0_i32_0 = arith.constant 0 : i32
    %c0_i32_1 = arith.constant 0 : i32
    return %arg0, %c0_i32, %c0_i32_0 : i32, i32, i32
  }
}

</mosaic_0001>

<llo_original>
// kernel: tpu_custom_call.1
$region0: #{tpu_custom_call.1}
  #allocation0 [shape = 'u32[]', space=smem, size = 0x4, offset = 0x4, fixed_abs, tag = 'smem constant byte address 0x4 - core index']
  #allocation1 [shape = 'u32[144,128]{1,0:T(1,128)}', space=vmem, size = 0x12000, scoped, tag = 'internal scratch']
  #allocation2 [shape = 'f32[4,128]{1,0:T(4,128)}', space=vmem, size = 0x800, scoped, tag = 'scratch operand']
  #allocation3 [shape = 'f32[4,128]{1,0:T(4,128)}', space=vmem, size = 0x800, scoped, tag = 'scratch operand']
  #allocation4 [shape = 'bf16[4,256]{1,0:T(4,128)(2,1)}', space=vmem, size = 0x800, scoped, tag = 'scratch operand']
  #allocation5 [shape = 'f32[4,1]{1,0:T(4,128)}', space=vmem, size = 0x800, scoped, tag = 'scratch operand']
  #allocation6 [shape = 's32[4,1]{1,0:T(4,128)}', space=vmem, size = 0x800, scoped, tag = 'scratch operand']
  #allocation7 [shape = 'f32[4,128]{1,0:T(4,128)}', space=vmem, size = 0x800, scoped, tag = 'scratch operand']
  #allocation8 [shape = 'f32[4,1]{1,0:T(4,128)}', space=vmem, size = 0x800, scoped, tag = 'scratch operand']
  %s0 = inlined_call_operand.hbm [shape: f32[4,128], index: 0, kind: input, shape index: {}]
  %s1 = inlined_call_operand.hbm [shape: f32[4,128], index: 1, kind: input, shape index: {}]
  %s2 = inlined_call_operand.vmem [shape: f32[4,128], index: 2, kind: input, shape index: {}]
  %s3 = inlined_call_operand.hbm [shape: bf16[128,128], index: 3, kind: input, shape index: {}]
  %s4 = inlined_call_operand.hbm [shape: bf16[256,128], index: 4, kind: input, shape index: {}]
  %s5 = inlined_call_operand.vmem [shape: f32[1,128], index: 5, kind: input, shape index: {}]
  %s6 = inlined_call_operand.hbm [shape: bf16[128,128], index: 6, kind: input, shape index: {}]
  %s7 = inlined_call_operand.vmem [shape: f32[1,128], index: 7, kind: input, shape index: {}]
  %s8 = inlined_call_operand.vmem [shape: f32[8,4,4], index: 8, kind: output, shape index: {0}]
  %s9 = inlined_call_operand.hbm [shape: f32[8,4,128], index: 9, kind: output, shape index: {1}]
  %10 = xla_tuple %s8, %s9
  %s11 = sld [smem:[#allocation0]]
  $region105: #{tpu_custom_call.1} parent=0
    _
  %s13 = ssub.s32 1, %s11
  %s14 = scalar_select 0, %s13, %s11
  $region1: #{tpu_custom_call.1} parent=0
    #allocation9 [shape = 'u8[2048]{0}', space=vmem, size = 0x800, scoped, tag = 'input window, operand 0, single buffered']
    #allocation10 [shape = 's32[2]{0}', space=sflag, size = 0x8, scoped, tag = 'scoped memory for tpu_custom_call.1']
    #allocation11 [shape = 's32[2]{0}', space=sflag, size = 0x8, scoped, tag = 'scoped memory for tpu_custom_call.1']
    #allocation12 [shape = 'u8[2048]{0}', space=vmem, size = 0x800, scoped, tag = 'input window, operand 1, single buffered']
    #allocation13 [shape = 's32[1]{0}', space=sflag, size = 0x4, scoped, tag = 'scoped memory for tpu_custom_call.1']
    #allocation14 [shape = 'u8[32768]{0}', space=vmem, size = 0x8000, scoped, tag = 'input window, operand 3, single buffered']
    #allocation15 [shape = 'u8[65536]{0}', space=vmem, size = 0x10000, scoped, tag = 'input window, operand 4, single buffered']
    #allocation16 [shape = 's32[1]{0}', space=sflag, size = 0x4, scoped, tag = 'scoped memory for tpu_custom_call.1']
    #allocation17 [shape = 'u8[32768]{0}', space=vmem, size = 0x8000, scoped, tag = 'input window, operand 6, single buffered']
    #allocation18 [shape = 'u8[4096]{0}', space=vmem, size = 0x1000, scoped, tag = 'output window, operand 1']
    %15 = vsyncpa [#allocation10], 0
    %16 = vsyncpa [#allocation13], 0
    %17 = vsyncpa [#allocation16], 0
    %18 = vsyncpa [#allocation11], 0
    %s19 = scalar_lea.sflag [#allocation11], 1
    %20 = vsyncpa %s19, 0
    loop: start=0, step=1, limit=10
    $region2: #{tpu_custom_call.1} parent=1 // loop_pre_header
      _
    $region3: #{tpu_custom_call.1} parent=1 // loop_header
      %s22 = sphi 0, %s26
      %p23 = scmp.ge.s32.totalorder %s22, 10
      %s30 = sphi 0, %s30
      %s32 = sphi 0, %s30
      %s33 = sphi 0, %s32
      %s47 = sphi 0, %s33
      %s51 = sphi 0, %s51
      %s53 = sphi 0, %s51
      %s54 = sphi 0, %s53
      %s68 = sphi 0, %s54
      %s72 = sphi 0, %s72
      %s74 = sphi 0, %s72
      %s75 = sphi 0, %s74
      %s89 = sphi 0, %s75
      %s93 = sphi 0, %s93
      %s95 = sphi 0, %s93
      %s96 = sphi 0, %s95
      %s110 = sphi 0, %s96
      %s114 = sphi 0, %s114
      %s116 = sphi 0, %s114
      %s117 = sphi 0, %s116
      %s131 = sphi 0, %s117
      %s135 = sphi 0, %s135
      %s137 = sphi 0, %s135
      %s138 = sphi 0, %s137
      %s152 = sphi 0, %s138
      %s156 = sphi 0, %s156
      %s158 = sphi 0, %s156
      %s159 = sphi 0, %s158
      %s173 = sphi 0, %s159
      %s177 = sphi 0, %s177
      %s179 = sphi 0, %s177
      %s180 = sphi 0, %s179
      %s194 = sphi 0, %s180
      %s200 = sphi 0, %s202
      %s203 = sphi 0, %s200
      %s204 = sphi 0, %s203
      %s220 = sphi 0, %s204
      %s226 = sphi 0, %s228
      %s229 = sphi 0, %s226
      %s230 = sphi 0, %s229
      %s246 = sphi 0, %s230
    $region4: #{tpu_custom_call.1} parent=1 // loop_header_branch
      %25 = sbr.rel (%p23) target = $region8
    $region5: #{tpu_custom_call.1} parent=1 // loop_body
      %s27 = ssub.s32 %s22, 1
      %s28 = ssub.s32 %s22, 2
      %s29 = sadd.s32 %s22, 1
      %s31 = sadd.s32 %s30, 1
      %p34 = scmp.eq.s32.totalorder %s22, 7
      %p35 = scmp.ne.s32.totalorder %s30, %s32
      %p36 = scmp.eq.s32.totalorder %s22, 0
      %p37 = por %p35, %p36
      %p38 = scmp.ne.s32.totalorder %s30, %s32
      %p39 = scmp.eq.s32.totalorder %s27, 7
      %p40 = por %p38, %p39
      %p41 = scmp.ne.s32.totalorder %s32, %s33
      %p42 = scmp.eq.s32.totalorder %s27, 0
      %p43 = por %p41, %p42
      %p44 = scmp.ne.s32.totalorder %s32, %s33
      %p45 = scmp.eq.s32.totalorder %s28, 7
      %p46 = por %p44, %p45
      %p48 = scmp.ne.s32.totalorder %s33, %s47
      %p49 = scmp.eq.s32.totalorder %s28, 0
      %p50 = por %p48, %p49
      %s52 = sadd.s32 %s51, 1
      %p55 = scmp.eq.s32.totalorder %s22, 7
      %p56 = scmp.ne.s32.totalorder %s51, %s53
      %p57 = scmp.eq.s32.totalorder %s22, 0
      %p58 = por %p56, %p57
      %p59 = scmp.ne.s32.totalorder %s51, %s53
      %p60 = scmp.eq.s32.totalorder %s27, 7
      %p61 = por %p59, %p60
      %p62 = scmp.ne.s32.totalorder %s53, %s54
      %p63 = scmp.eq.s32.totalorder %s27, 0
      %p64 = por %p62, %p63
      %p65 = scmp.ne.s32.totalorder %s53, %s54
      %p66 = scmp.eq.s32.totalorder %s28, 7
      %p67 = por %p65, %p66
      %p69 = scmp.ne.s32.totalorder %s54, %s68
      %p70 = scmp.eq.s32.totalorder %s28, 0
      %p71 = por %p69, %p70
      %s73 = sadd.s32 %s72, 1
      %p76 = scmp.eq.s32.totalorder %s22, 7
      %p77 = scmp.ne.s32.totalorder %s72, %s74
      %p78 = scmp.eq.s32.totalorder %s22, 0
      %p79 = por %p77, %p78
      %p80 = scmp.ne.s32.totalorder %s72, %s74
      %p81 = scmp.eq.s32.totalorder %s27, 7
      %p82 = por %p80, %p81
      %p83 = scmp.ne.s32.totalorder %s74, %s75
      %p84 = scmp.eq.s32.totalorder %s27, 0
      %p85 = por %p83, %p84
      %p86 = scmp.ne.s32.totalorder %s74, %s75
      %p87 = scmp.eq.s32.totalorder %s28, 7
      %p88 = por %p86, %p87
      %p90 = scmp.ne.s32.totalorder %s75, %s89
      %p91 = scmp.eq.s32.totalorder %s28, 0
      %p92 = por %p90, %p91
      %s94 = sadd.s32 %s93, 1
      %p97 = scmp.eq.s32.totalorder %s22, 7
      %p98 = scmp.ne.s32.totalorder %s93, %s95
      %p99 = scmp.eq.s32.totalorder %s22, 0
      %p100 = por %p98, %p99
      %p101 = scmp.ne.s32.totalorder %s93, %s95
      %p102 = scmp.eq.s32.totalorder %s27, 7
      %p103 = por %p101, %p102
      %p104 = scmp.ne.s32.totalorder %s95, %s96
      %p105 = scmp.eq.s32.totalorder %s27, 0
      %p106 = por %p104, %p105
      %p107 = scmp.ne.s32.totalorder %s95, %s96
      %p108 = scmp.eq.s32.totalorder %s28, 7
      %p109 = por %p107, %p108
      %p111 = scmp.ne.s32.totalorder %s96, %s110
      %p112 = scmp.eq.s32.totalorder %s28, 0
      %p113 = por %p111, %p112
      %s115 = sadd.s32 %s114, 1
      %p118 = scmp.eq.s32.totalorder %s22, 7
      %p119 = scmp.ne.s32.totalorder %s114, %s116
      %p120 = scmp.eq.s32.totalorder %s22, 0
      %p121 = por %p119, %p120
      %p122 = scmp.ne.s32.totalorder %s114, %s116
      %p123 = scmp.eq.s32.totalorder %s27, 7
      %p124 = por %p122, %p123
      %p125 = scmp.ne.s32.totalorder %s116, %s117
      %p126 = scmp.eq.s32.totalorder %s27, 0
      %p127 = por %p125, %p126
      %p128 = scmp.ne.s32.totalorder %s116, %s117
      %p129 = scmp.eq.s32.totalorder %s28, 7
      %p130 = por %p128, %p129
      %p132 = scmp.ne.s32.totalorder %s117, %s131
      %p133 = scmp.eq.s32.totalorder %s28, 0
      %p134 = por %p132, %p133
      %s136 = sadd.s32 %s135, 1
      %p139 = scmp.eq.s32.totalorder %s22, 7
      %p140 = scmp.ne.s32.totalorder %s135, %s137
      %p141 = scmp.eq.s32.totalorder %s22, 0
      %p142 = por %p140, %p141
      %p143 = scmp.ne.s32.totalorder %s135, %s137
      %p144 = scmp.eq.s32.totalorder %s27, 7
      %p145 = por %p143, %p144
      %p146 = scmp.ne.s32.totalorder %s137, %s138
      %p147 = scmp.eq.s32.totalorder %s27, 0
      %p148 = por %p146, %p147
      %p149 = scmp.ne.s32.totalorder %s137, %s138
      %p150 = scmp.eq.s32.totalorder %s28, 7
      %p151 = por %p149, %p150
      %p153 = scmp.ne.s32.totalorder %s138, %s152
      %p154 = scmp.eq.s32.totalorder %s28, 0
      %p155 = por %p153, %p154
      %s157 = sadd.s32 %s156, 1
      %p160 = scmp.eq.s32.totalorder %s22, 7
      %p161 = scmp.ne.s32.totalorder %s156, %s158
      %p162 = scmp.eq.s32.totalorder %s22, 0
      %p163 = por %p161, %p162
      %p164 = scmp.ne.s32.totalorder %s156, %s158
      %p165 = scmp.eq.s32.totalorder %s27, 7
      %p166 = por %p164, %p165
      %p167 = scmp.ne.s32.totalorder %s158, %s159
      %p168 = scmp.eq.s32.totalorder %s27, 0
      %p169 = por %p167, %p168
      %p170 = scmp.ne.s32.totalorder %s158, %s159
      %p171 = scmp.eq.s32.totalorder %s28, 7
      %p172 = por %p170, %p171
      %p174 = scmp.ne.s32.totalorder %s159, %s173
      %p175 = scmp.eq.s32.totalorder %s28, 0
      %p176 = por %p174, %p175
      %s178 = sadd.s32 %s177, 1
      %p181 = scmp.eq.s32.totalorder %s22, 7
      %p182 = scmp.ne.s32.totalorder %s177, %s179
      %p183 = scmp.eq.s32.totalorder %s22, 0
      %p184 = por %p182, %p183
      %p185 = scmp.ne.s32.totalorder %s177, %s179
      %p186 = scmp.eq.s32.totalorder %s27, 7
      %p187 = por %p185, %p186
      %p188 = scmp.ne.s32.totalorder %s179, %s180
      %p189 = scmp.eq.s32.totalorder %s27, 0
      %p190 = por %p188, %p189
      %p191 = scmp.ne.s32.totalorder %s179, %s180
      %p192 = scmp.eq.s32.totalorder %s28, 7
      %p193 = por %p191, %p192
      %p195 = scmp.ne.s32.totalorder %s180, %s194
      %p196 = scmp.eq.s32.totalorder %s28, 0
      %p197 = por %p195, %p196
      %s198 = ssub.s32 %s22, %s29
      %p199 = scmp.eq.s32.totalorder %s198, 0
      %s201 = sadd.s32 %s200, 1
      %s202 = scalar_select %p199, %s200, %s201
      %p205 = pneg %p199
      %p206 = scmp.eq.s32.totalorder %s22, 7
      %p207 = por %p205, %p206
      %p208 = scmp.ne.s32.totalorder %s200, %s203
      %p209 = scmp.eq.s32.totalorder %s22, 0
      %p210 = por %p208, %p209
      %p211 = scmp.ne.s32.totalorder %s200, %s203
      %p212 = scmp.eq.s32.totalorder %s27, 7
      %p213 = por %p211, %p212
      %p214 = scmp.ne.s32.totalorder %s203, %s204
      %p215 = scmp.eq.s32.totalorder %s27, 0
      %p216 = por %p214, %p215
      %p217 = scmp.ne.s32.totalorder %s203, %s204
      %p218 = scmp.eq.s32.totalorder %s28, 7
      %p219 = por %p217, %p218
      %p221 = scmp.ne.s32.totalorder %s204, %s220
      %p222 = scmp.eq.s32.totalorder %s28, 0
      %p223 = por %p221, %p222
      %s224 = ssub.s32 %s22, %s29
      %p225 = scmp.eq.s32.totalorder %s224, 0
      %s227 = sadd.s32 %s226, 1
      %s228 = scalar_select %p225, %s226, %s227
      %p231 = pneg %p225
      %p232 = scmp.eq.s32.totalorder %s22, 7
      %p233 = por %p231, %p232
      %p234 = scmp.ne.s32.totalorder %s226, %s229
      %p235 = scmp.eq.s32.totalorder %s22, 0
      %p236 = por %p234, %p235
      %p237 = scmp.ne.s32.totalorder %s226, %s229
      %p238 = scmp.eq.s32.totalorder %s27, 7
      %p239 = por %p237, %p238
      %p240 = scmp.ne.s32.totalorder %s229, %s230
      %p241 = scmp.eq.s32.totalorder %s27, 0
      %p242 = por %p240, %p241
      %p243 = scmp.ne.s32.totalorder %s229, %s230
      %p244 = scmp.eq.s32.totalorder %s28, 7
      %p245 = por %p243, %p244
      %p247 = scmp.ne.s32.totalorder %s230, %s246
      %p248 = scmp.eq.s32.totalorder %s28, 0
      %p249 = por %p247, %p248
      %p250 = scmp.le.s32.totalorder 1, %s22
      %p251 = scmp.lt.s32.totalorder %s22, 9
      %p252 = pnand %p250, %p251
      %p253 = pneg %p252
      // Predicated region
      $region9: #{tpu_custom_call.1} parent=5 // pred_check
        _
      $region10: #{tpu_custom_call.1} parent=5 // pred_check_branch
        %255 = sbr.rel (%p252) target = $region12
      $region11: #{tpu_custom_call.1} parent=5 // pred_region
        %s256 = ssub.s32 %s22, 1
        // Predicated region
        $region13: #{tpu_custom_call.1} parent=11 // pred_check
          %p257 = pneg %p43
        $region14: #{tpu_custom_call.1} parent=11 // pred_check_branch
          %259 = sbr.rel (%p257) target = $region16
        $region15: #{tpu_custom_call.1} parent=11 // pred_region
          %s261 = ssub.s32 64, 64
          %262 = vsyncadd [#allocation10], %s261
          %s264 = sshll.u32 [#allocation9], 4
          %s265 = int_to_ptr.vmem [resolvable:$true] %s264
          %267 = dma.hbm_to_vmem [thread:$0]  %s0, 64, %s265, [#allocation10]
        $region16: #{tpu_custom_call.1} parent=11 // pred_fallthru
          _
        // Predicated region
        $region17: #{tpu_custom_call.1} parent=11 // pred_check
          %p268 = pneg %p64
        $region18: #{tpu_custom_call.1} parent=11 // pred_check_branch
          %270 = sbr.rel (%p268) target = $region20
        $region19: #{tpu_custom_call.1} parent=11 // pred_region
          %s272 = ssub.s32 64, 64
          %273 = vsyncadd [#allocation13], %s272
          %s275 = sshll.u32 [#allocation12], 4
          %s276 = int_to_ptr.vmem [resolvable:$true] %s275
          %278 = dma.hbm_to_vmem [thread:$0]  %s1, 64, %s276, [#allocation13]
        $region20: #{tpu_custom_call.1} parent=11 // pred_fallthru
          _
        // Predicated region
        $region21: #{tpu_custom_call.1} parent=11 // pred_check
          %p279 = pneg %p85
        $region22: #{tpu_custom_call.1} parent=11 // pred_check_branch
          %281 = sbr.rel (%p279) target = $region24
        $region23: #{tpu_custom_call.1} parent=11 // pred_region
          _
        $region24: #{tpu_custom_call.1} parent=11 // pred_fallthru
          _
        // Predicated region
        $region25: #{tpu_custom_call.1} parent=11 // pred_check
          %p282 = pneg %p106
        $region26: #{tpu_custom_call.1} parent=11 // pred_check_branch
          %284 = sbr.rel (%p282) target = $region28
        $region27: #{tpu_custom_call.1} parent=11 // pred_region
          %s286 = ssub.s32 1024, 1024
          %287 = vsyncadd [#allocation13], %s286
          %s288 = sshll.u32 [#allocation14], 4
          %s289 = int_to_ptr.vmem [resolvable:$true] %s288
          %294 = dma.hbm_to_vmem [thread:$0]  %s3, 1024, %s289, [#allocation13], 64, 64, 4
        $region28: #{tpu_custom_call.1} parent=11 // pred_fallthru
          _
        // Predicated region
        $region29: #{tpu_custom_call.1} parent=11 // pred_check
          %p295 = pneg %p127
        $region30: #{tpu_custom_call.1} parent=11 // pred_check_branch
          %297 = sbr.rel (%p295) target = $region32
        $region31: #{tpu_custom_call.1} parent=11 // pred_region
          %s299 = ssub.s32 2048, 2048
          %300 = vsyncadd [#allocation16], %s299
          %s301 = sshll.u32 [#allocation15], 4
          %s302 = int_to_ptr.vmem [resolvable:$true] %s301
          %307 = dma.hbm_to_vmem [thread:$0]  %s4, 2048, %s302, [#allocation16], 64, 64, 4
        $region32: #{tpu_custom_call.1} parent=11 // pred_fallthru
          _
        // Predicated region
        $region33: #{tpu_custom_call.1} parent=11 // pred_check
          %p308 = pneg %p148
        $region34: #{tpu_custom_call.1} parent=11 // pred_check_branch
          %310 = sbr.rel (%p308) target = $region36
        $region35: #{tpu_custom_call.1} parent=11 // pred_region
          _
        $region36: #{tpu_custom_call.1} parent=11 // pred_fallthru
          _
        // Predicated region
        $region37: #{tpu_custom_call.1} parent=11 // pred_check
          %p311 = pneg %p169
        $region38: #{tpu_custom_call.1} parent=11 // pred_check_branch
          %313 = sbr.rel (%p311) target = $region40
        $region39: #{tpu_custom_call.1} parent=11 // pred_region
          %s315 = ssub.s32 1024, 1024
          %316 = vsyncadd [#allocation16], %s315
          %s317 = sshll.u32 [#allocation17], 4
          %s318 = int_to_ptr.vmem [resolvable:$true] %s317
          %323 = dma.hbm_to_vmem [thread:$0]  %s6, 1024, %s318, [#allocation16], 64, 64, 4
        $region40: #{tpu_custom_call.1} parent=11 // pred_fallthru
          _
        // Predicated region
        $region41: #{tpu_custom_call.1} parent=11 // pred_check
          %p324 = pneg %p190
        $region42: #{tpu_custom_call.1} parent=11 // pred_check_branch
          %326 = sbr.rel (%p324) target = $region44
        $region43: #{tpu_custom_call.1} parent=11 // pred_region
          _
        $region44: #{tpu_custom_call.1} parent=11 // pred_fallthru
          _
      $region12: #{tpu_custom_call.1} parent=5 // pred_fallthru
        _
      %p327 = scmp.lt.s32.totalorder %s22, 8
      // Predicated region
      $region45: #{tpu_custom_call.1} parent=5 // pred_check
        %p328 = pneg %p327
      $region46: #{tpu_custom_call.1} parent=5 // pred_check_branch
        %330 = sbr.rel (%p328) target = $region48
      $region47: #{tpu_custom_call.1} parent=5 // pred_region
        _
      $region48: #{tpu_custom_call.1} parent=5 // pred_fallthru
        _
      %p331 = scmp.le.s32.totalorder 1, %s22
      %p332 = scmp.lt.s32.totalorder %s22, 9
      %p333 = pnand %p331, %p332
      %p334 = pneg %p333
      // Predicated region
      $region49: #{tpu_custom_call.1} parent=5 // pred_check
        _
      $region50: #{tpu_custom_call.1} parent=5 // pred_check_branch
        %336 = sbr.rel (%p333) target = $region52
      $region51: #{tpu_custom_call.1} parent=5 // pred_region
        %s337 = ssub.s32 %s22, 1
        // Predicated region
        $region53: #{tpu_custom_call.1} parent=51 // pred_check
          %p338 = pneg %p43
        $region54: #{tpu_custom_call.1} parent=51 // pred_check_branch
          %340 = sbr.rel (%p338) target = $region56
        $region55: #{tpu_custom_call.1} parent=51 // pred_region
          %341 = dma.done [#allocation10], 64
        $region56: #{tpu_custom_call.1} parent=51 // pred_fallthru
          _
        // Predicated region
        $region57: #{tpu_custom_call.1} parent=51 // pred_check
          %p342 = pneg %p64
        $region58: #{tpu_custom_call.1} parent=51 // pred_check_branch
          %344 = sbr.rel (%p342) target = $region60
        $region59: #{tpu_custom_call.1} parent=51 // pred_region
          %345 = dma.done [#allocation13], 64
        $region60: #{tpu_custom_call.1} parent=51 // pred_fallthru
          _
        // Predicated region
        $region61: #{tpu_custom_call.1} parent=51 // pred_check
          %p346 = pneg %p106
        $region62: #{tpu_custom_call.1} parent=51 // pred_check_branch
          %348 = sbr.rel (%p346) target = $region64
        $region63: #{tpu_custom_call.1} parent=51 // pred_region
          %349 = dma.done [#allocation13], 1024
        $region64: #{tpu_custom_call.1} parent=51 // pred_fallthru
          _
        // Predicated region
        $region65: #{tpu_custom_call.1} parent=51 // pred_check
          %p350 = pneg %p127
        $region66: #{tpu_custom_call.1} parent=51 // pred_check_branch
          %352 = sbr.rel (%p350) target = $region68
        $region67: #{tpu_custom_call.1} parent=51 // pred_region
          %353 = dma.done [#allocation16], 2048
        $region68: #{tpu_custom_call.1} parent=51 // pred_fallthru
          _
        // Predicated region
        $region69: #{tpu_custom_call.1} parent=51 // pred_check
          %p354 = pneg %p169
        $region70: #{tpu_custom_call.1} parent=51 // pred_check_branch
          %356 = sbr.rel (%p354) target = $region72
        $region71: #{tpu_custom_call.1} parent=51 // pred_region
          %357 = dma.done [#allocation16], 1024
        $region72: #{tpu_custom_call.1} parent=51 // pred_fallthru
          _
        %p358 = pneg %p43
        %p359 = pneg %p40
        %p360 = pneg %p64
        %p361 = pneg %p61
        %p362 = pneg %p85
        %p363 = pneg %p82
        %p364 = pneg %p106
        %p365 = pneg %p103
        %p366 = pneg %p127
        %p367 = pneg %p124
        %p368 = pneg %p148
        %p369 = pneg %p145
        %p370 = pneg %p169
        %p371 = pneg %p166
        %p372 = pneg %p190
        %p373 = pneg %p187
        %p374 = pneg %p216
        %p375 = pneg %p213
        %p376 = scmp.lt.s32.totalorder %s27, 7
        %s377 = scalar_select %p376, %s27, 7
        %s378 = smul.addr %s377, 4
        %s379 = scalar_lea.vmem %s8, %s378
        %p380 = pneg %p242
        %p381 = pneg %p239
        %s382 = sand.u32 %s229, 1
        %s383 = scalar_lea.sflag [#allocation11], %s382
        %s384 = sand.u32 %s229, 1
        %s385 = smul.addr %s384, 4
        %s386 = scalar_lea.vmem [#allocation18], %s385
        %p387 = scmp.lt.s32.totalorder %s27, 7
        %s388 = scalar_select %p387, %s27, 7
        %s389 = smul.addr %s388, 4
        %s390 = scalar_lea.vmem %s8, %s389
        %p392 = scmp.eq.s32.totalorder %s27, 0
        // Predicated region
        $region73: #{tpu_custom_call.1} parent=51 // pred_check
          %p393 = pneg %p392
        $region74: #{tpu_custom_call.1} parent=51 // pred_check_branch
          %395 = sbr.rel (%p393) target = $region76
        $region75: #{tpu_custom_call.1} parent=51 // pred_region
          %v396 = vld [vmem:[#allocation12] sm:$0xf]
          %397 = vst [vmem:[#allocation2] sm:$0xf] %v396
          %v398 = vld [vmem:[%s2] sm:$0xf]
          %399 = vst [vmem:[#allocation3] sm:$0xf] %v398
          %vm400 = vcmask 3072
          %401 = vst.msk [vmem:[#allocation5] sm:$0xf] %vm400, 0.0
          %v402 = vld [vmem:[#allocation9] sm:$0xf]
          %403 = vst [vmem:[#allocation7] sm:$0xf] %v402
          %404 = vst.msk [vmem:[#allocation8] sm:$0xf] %vm400, 0.0
        $region76: #{tpu_custom_call.1} parent=51 // pred_fallthru
          _
        %p405 = scmp.gt.s32.totalorder %s27, 0
        // Predicated region
        $region77: #{tpu_custom_call.1} parent=51 // pred_check
          %p406 = pneg %p405
        $region78: #{tpu_custom_call.1} parent=51 // pred_check_branch
          %408 = sbr.rel (%p406) target = $region80
        $region79: #{tpu_custom_call.1} parent=51 // pred_region
          %v409 = vlaneseq
          %v410 = vand.u32 %v409, 127
          %v411 = vld [vmem:[#allocation4] sm:$0xf]
          %v412 = vld [vmem:[#allocation15] sm:$0xf]
          %v413 = vld [vmem:[#allocation15 + $0x4] sm:$0xf]
          %v414 = vld [vmem:[#allocation15 + $0x8] sm:$0xf]
          %v415 = vld [vmem:[#allocation15 + $0xc] sm:$0xf]
          %v416 = vld [vmem:[#allocation15 + $0x10] sm:$0xf]
          %v417 = vld [vmem:[#allocation15 + $0x14] sm:$0xf]
          %v418 = vld [vmem:[#allocation15 + $0x18] sm:$0xf]
          %v419 = vld [vmem:[#allocation15 + $0x1c] sm:$0xf]
          %v420 = vld [vmem:[#allocation15 + $0x20] sm:$0xf]
          %v421 = vld [vmem:[#allocation15 + $0x24] sm:$0xf]
          %v422 = vld [vmem:[#allocation15 + $0x28] sm:$0xf]
          %v423 = vld [vmem:[#allocation15 + $0x2c] sm:$0xf]
          %v424 = vld [vmem:[#allocation15 + $0x30] sm:$0xf]
          %v425 = vld [vmem:[#allocation15 + $0x34] sm:$0xf]
          %v426 = vld [vmem:[#allocation15 + $0x38] sm:$0xf]
          %v427 = vld [vmem:[#allocation15 + $0x3c] sm:$0xf]
          %v428 = vld [vmem:[#allocation15 + $0x40] sm:$0xf]
          %v429 = vld [vmem:[#allocation15 + $0x44] sm:$0xf]
          %v430 = vld [vmem:[#allocation15 + $0x48] sm:$0xf]
          %v431 = vld [vmem:[#allocation15 + $0x4c] sm:$0xf]
          %v432 = vld [vmem:[#allocation15 + $0x50] sm:$0xf]
          %v433 = vld [vmem:[#allocation15 + $0x54] sm:$0xf]
          %v434 = vld [vmem:[#allocation15 + $0x58] sm:$0xf]
          %v435 = vld [vmem:[#allocation15 + $0x5c] sm:$0xf]
          %v436 = vld [vmem:[#allocation15 + $0x60] sm:$0xf]
          %v437 = vld [vmem:[#allocation15 + $0x64] sm:$0xf]
          %v438 = vld [vmem:[#allocation15 + $0x68] sm:$0xf]
          %v439 = vld [vmem:[#allocation15 + $0x6c] sm:$0xf]
          %v440 = vld [vmem:[#allocation15 + $0x70] sm:$0xf]
          %v441 = vld [vmem:[#allocation15 + $0x74] sm:$0xf]
          %v442 = vld [vmem:[#allocation15 + $0x78] sm:$0xf]
          %v443 = vld [vmem:[#allocation15 + $0x7c] sm:$0xf]
          %v444 = vld [vmem:[%s5] sm:$0x1]
          %v446 = vlaneseq
          %v447 = vshrl.u32 %v446, 7
          %v448 = vsub.s32 0, %v447
          %v449 = vrot.slane %v444, %v448
          %v453 = vunpack.c.l.s4 1983009808
          %v454 = vunpack.c.0.s8 %v453
          %v455 = vlaneseq
          %v456 = vshrl.u32 %v455, 7
          %v457 = vsub.s32 %v454, %v456
          %v458 = vrot.slane %v411, %v457
          %v459 = vcombine.high %v458, %v458
          %v494 = vunpack.c.l.b16 %v412
          %v495 = vunpack.c.l.b16 %v413
          %v496 = vunpack.c.l.b16 %v414
          %v497 = vunpack.c.l.b16 %v415
          %v498 = vunpack.c.l.b16 %v416
          %v499 = vunpack.c.l.b16 %v417
          %v500 = vunpack.c.l.b16 %v418
          %v501 = vunpack.c.l.b16 %v419
          %v502 = vunpack.c.l.b16 %v420
          %v503 = vunpack.c.l.b16 %v421
          %v504 = vunpack.c.l.b16 %v422
          %v505 = vunpack.c.l.b16 %v423
          %v506 = vunpack.c.l.b16 %v424
          %v507 = vunpack.c.l.b16 %v425
          %v508 = vunpack.c.l.b16 %v426
          %v509 = vunpack.c.l.b16 %v427
          %v510 = vunpack.c.l.b16 %v428
          %v511 = vunpack.c.l.b16 %v429
          %v512 = vunpack.c.l.b16 %v430
          %v513 = vunpack.c.l.b16 %v431
          %v514 = vunpack.c.l.b16 %v432
          %v515 = vunpack.c.l.b16 %v433
          %v516 = vunpack.c.l.b16 %v434
          %v517 = vunpack.c.l.b16 %v435
          %v518 = vunpack.c.l.b16 %v436
          %v519 = vunpack.c.l.b16 %v437
          %v520 = vunpack.c.l.b16 %v438
          %v521 = vunpack.c.l.b16 %v439
          %v522 = vunpack.c.l.b16 %v440
          %v523 = vunpack.c.l.b16 %v441
          %v524 = vunpack.c.l.b16 %v442
          %v525 = vunpack.c.l.b16 %v443
          %v526 = vpack.c.b16 %v495, %v494
          %v527 = vpack.c.b16 %v497, %v496
          %v528 = vpack.c.b16 %v499, %v498
          %v529 = vpack.c.b16 %v501, %v500
          %v530 = vpack.c.b16 %v503, %v502
          %v531 = vpack.c.b16 %v505, %v504
          %v532 = vpack.c.b16 %v507, %v506
          %v533 = vpack.c.b16 %v509, %v508
          %v534 = vpack.c.b16 %v511, %v510
          %v535 = vpack.c.b16 %v513, %v512
          %v536 = vpack.c.b16 %v515, %v514
          %v537 = vpack.c.b16 %v517, %v516
          %v538 = vpack.c.b16 %v519, %v518
          %v539 = vpack.c.b16 %v521, %v520
          %v540 = vpack.c.b16 %v523, %v522
          %v541 = vpack.c.b16 %v525, %v524
          %558 = vmatprep.subr.bf16.mxu0 0
          %559 = vmatpush1.bf16.msra.mxu0 %v526
          %560 = vmatprep.subr.bf16.mxu0 0
          %561 = vmatpush1.bf16.msra.mxu0 %v527
          %562 = vmatprep.subr.bf16.mxu0 0
          %563 = vmatpush1.bf16.msra.mxu0 %v528
          %564 = vmatprep.subr.bf16.mxu0 0
          %565 = vmatpush1.bf16.msra.mxu0 %v529
          %566 = vmatprep.subr.bf16.mxu0 0
          %567 = vmatpush1.bf16.msra.mxu0 %v530
          %568 = vmatprep.subr.bf16.mxu0 0
          %569 = vmatpush1.bf16.msra.mxu0 %v531
          %570 = vmatprep.subr.bf16.mxu0 0
          %571 = vmatpush1.bf16.msra.mxu0 %v532
          %572 = vmatprep.subr.bf16.mxu0 0
          %573 = vmatpush1.bf16.msra.mxu0 %v533
          %574 = vmatprep.subr.bf16.mxu0 0
          %575 = vmatpush1.bf16.msra.mxu0 %v534
          %576 = vmatprep.subr.bf16.mxu0 0
          %577 = vmatpush1.bf16.msra.mxu0 %v535
          %578 = vmatprep.subr.bf16.mxu0 0
          %579 = vmatpush1.bf16.msra.mxu0 %v536
          %580 = vmatprep.subr.bf16.mxu0 0
          %581 = vmatpush1.bf16.msra.mxu0 %v537
          %582 = vmatprep.subr.bf16.mxu0 0
          %583 = vmatpush1.bf16.msra.mxu0 %v538
          %584 = vmatprep.subr.bf16.mxu0 0
          %585 = vmatpush1.bf16.msra.mxu0 %v539
          %586 = vmatprep.subr.bf16.mxu0 0
          %587 = vmatpush1.bf16.msra.mxu0 %v540
          %588 = vmatprep.subr.bf16.mxu0 0
          %589 = vmatpush1.bf16.msra.mxu0 %v541
          %590 = vmatprep.mubr.bf16.mxu0 %v459
          %591 = vmatmul.mubr.bf16.gmra.mrb[0].mxu0 %v458
          %v592 = vpop.f32.mrb[0].mxu0
          %v593 = vadd.f32 %v449, %v592
          %v594 = vpop.f32.mrb[0].mxu0
          %v595 = vpop.f32.mrb[0].mxu0
          %v596 = vpop.f32.mrb[0].mxu0
          %597 = vdwg.mxu0
          %v598 = vtanh.pop %v593
          %599 = vst [vmem:[#allocation2] sm:$0xf] %v598
          %v600 = vpack.c.bf16 %v598, %v598
          %v601 = vld [vmem:[#allocation17] sm:$0xf]
          %v602 = vld [vmem:[#allocation17 + $0x4] sm:$0xf]
          %v603 = vld [vmem:[#allocation17 + $0x8] sm:$0xf]
          %v604 = vld [vmem:[#allocation17 + $0xc] sm:$0xf]
          %v605 = vld [vmem:[#allocation17 + $0x10] sm:$0xf]
          %v606 = vld [vmem:[#allocation17 + $0x14] sm:$0xf]
          %v607 = vld [vmem:[#allocation17 + $0x18] sm:$0xf]
          %v608 = vld [vmem:[#allocation17 + $0x1c] sm:$0xf]
          %v609 = vld [vmem:[#allocation17 + $0x20] sm:$0xf]
          %v610 = vld [vmem:[#allocation17 + $0x24] sm:$0xf]
          %v611 = vld [vmem:[#allocation17 + $0x28] sm:$0xf]
          %v612 = vld [vmem:[#allocation17 + $0x2c] sm:$0xf]
          %v613 = vld [vmem:[#allocation17 + $0x30] sm:$0xf]
          %v614 = vld [vmem:[#allocation17 + $0x34] sm:$0xf]
          %v615 = vld [vmem:[#allocation17 + $0x38] sm:$0xf]
          %v616 = vld [vmem:[#allocation17 + $0x3c] sm:$0xf]
          %v617 = vld [vmem:[%s7] sm:$0x1]
          %v619 = vlaneseq
          %v620 = vshrl.u32 %v619, 7
          %v621 = vsub.s32 0, %v620
          %v622 = vrot.slane %v617, %v621
          %v640 = vunpack.c.l.b16 %v601
          %v641 = vunpack.c.l.b16 %v602
          %v642 = vunpack.c.l.b16 %v603
          %v643 = vunpack.c.l.b16 %v604
          %v644 = vunpack.c.l.b16 %v605
          %v645 = vunpack.c.l.b16 %v606
          %v646 = vunpack.c.l.b16 %v607
          %v647 = vunpack.c.l.b16 %v608
          %v648 = vunpack.c.l.b16 %v609
          %v649 = vunpack.c.l.b16 %v610
          %v650 = vunpack.c.l.b16 %v611
          %v651 = vunpack.c.l.b16 %v612
          %v652 = vunpack.c.l.b16 %v613
          %v653 = vunpack.c.l.b16 %v614
          %v654 = vunpack.c.l.b16 %v615
          %v655 = vunpack.c.l.b16 %v616
          %v656 = vpack.c.b16 %v641, %v640
          %v657 = vpack.c.b16 %v643, %v642
          %v658 = vpack.c.b16 %v645, %v644
          %v659 = vpack.c.b16 %v647, %v646
          %v660 = vpack.c.b16 %v649, %v648
          %v661 = vpack.c.b16 %v651, %v650
          %v662 = vpack.c.b16 %v653, %v652
          %v663 = vpack.c.b16 %v655, %v654
          %672 = vmatprep.subr.bf16.mxu0 0
          %673 = vmatpush1.bf16.msra.mxu0 %v656
          %674 = vmatprep.subr.bf16.mxu0 0
          %675 = vmatpush1.bf16.msra.mxu0 %v657
          %676 = vmatprep.subr.bf16.mxu0 0
          %677 = vmatpush1.bf16.msra.mxu0 %v658
          %678 = vmatprep.subr.bf16.mxu0 0
          %679 = vmatpush1.bf16.msra.mxu0 %v659
          %680 = vmatprep.subr.bf16.mxu0 0
          %681 = vmatpush1.bf16.msra.mxu0 %v660
          %682 = vmatprep.subr.bf16.mxu0 0
          %683 = vmatpush1.bf16.msra.mxu0 %v661
          %684 = vmatprep.subr.bf16.mxu0 0
          %685 = vmatpush1.bf16.msra.mxu0 %v662
          %686 = vmatprep.subr.bf16.mxu0 0
          %687 = vmatpush1.bf16.msra.mxu0 %v663
          %688 = vmatprep.subr.bf16.mxu0 0
          %689 = vmatpush1.bf16.msra.mxu0 0
          %690 = vmatprep.subr.bf16.mxu0 0
          %691 = vmatpush1.bf16.msra.mxu0 0
          %692 = vmatprep.subr.bf16.mxu0 0
          %693 = vmatpush1.bf16.msra.mxu0 0
          %694 = vmatprep.subr.bf16.mxu0 0
          %695 = vmatpush1.bf16.msra.mxu0 0
          %696 = vmatprep.subr.bf16.mxu0 0
          %697 = vmatpush1.bf16.msra.mxu0 0
          %698 = vmatprep.subr.bf16.mxu0 0
          %699 = vmatpush1.bf16.msra.mxu0 0
          %700 = vmatprep.subr.bf16.mxu0 0
          %701 = vmatpush1.bf16.msra.mxu0 0
          %702 = vmatprep.subr.bf16.mxu0 0
          %703 = vmatpush1.bf16.msra.mxu0 0
          %704 = vmatprep.mubr.bf16.mxu0 0
          %705 = vmatmul.mubr.bf16.gmra.mrb[0].mxu0 %v600
          %v706 = vpop.f32.mrb[0].mxu0
          %v707 = vadd.f32 %v622, %v706
          %v708 = vpop.f32.mrb[0].mxu0
          %v709 = vpop.f32.mrb[0].mxu0
          %v710 = vpop.f32.mrb[0].mxu0
          %711 = vdwg.mxu0
          %vm712 = vcmask 1043456
          %v713 = vsel %vm712, %v707, -inf
          %714 = vmax.xlane.f32.xlu0 %v713
          %v715 = vpop.xlane.xlu0 %714
          %v716 = vsub.f32 %v707, %v715
          %v717 = vmul.f32 %v716, 1.442695
          %v718 = vpow.pop %v717
          %v719 = vsel %vm712, %v718, 0.0
          %720 = vadd.xlane.f32.xlu0 %v719
          %v721 = vpop.xlane.xlu0 %720
          %v722 = vlog2.pop %v721
          %v723 = vmul.f32 %v722, 0.6931472
          %v724 = vadd.f32 %v723, %v715
          %v725 = vld [vmem:[#allocation6] sm:$0xf]
          %726 = vset.pattern.permute.xlu0 0
          %727 = vperm.xlu0 %726, %v725
          %v728 = vpop.permute.xlu0 %727
          %vm729 = vcmp.eq.s32.totalorder %v410, %v728
          %v730 = vsel %vm729, -inf, %v707
          %731 = vst [vmem:[#allocation7] sm:$0xf] %v730
          %vm732 = vcmask 3072
          %733 = vst.msk [vmem:[#allocation8] sm:$0xf] %vm732, %v724
        $region80: #{tpu_custom_call.1} parent=51 // pred_fallthru
          _
        %v734 = vlaneseq
        %v735 = vand.u32 %v734, 127
        %v736 = vld [vmem:[#allocation7] sm:$0xf]
        %vm737 = vcmp.eq.s32.totalorder %v735, 127
        %v738 = vsub.f32 %v736, 1000.0
        %v739 = vsel %vm737, %v738, %v736
        %v740 = vld [vmem:[#allocation8] sm:$0xf]
        %742 = vset.pattern.permute.xlu0 0
        %743 = vperm.xlu0 %742, %v740
        %v744 = vpop.permute.xlu0 %743
        %v746 = vsub.f32 %v739, %v744
        %747 = vst [vmem:[%s386] sm:$0xf] %v746
        %vm748 = vcmask 1043456
        %v749 = vsel %vm748, %v739, -inf
        %750 = vmax.xlane.f32.xlu0 %v749
        %v751 = vpop.xlane.xlu0 %750
        %vm752 = vcmp.eq.f32.partialorder %v739, %v751
        %v753 = vsel %vm752, %v735, 128
        %v754 = vsel %vm748, %v753, 2147483647
        %v755 = vand.u32 %v754, 65535
        %v756 = vshra.s32 %v754, 16
        %v757 = vcvt.s32.f32 %v755
        %v758 = vcvt.s32.f32 %v756
        %759 = vmin.xlane.f32.xlu0 %v758
        %v760 = vpop.xlane.xlu0 %759
        %vm761 = vcmp.eq.f32.partialorder %v758, %v760
        %v762 = vsel %vm761, %v757, inf
        %763 = vmin.xlane.f32.xlu0 %v762
        %v764 = vpop.xlane.xlu0 %763
        %v765 = vcvt.f32.s32 %v764
        %v766 = vcvt.f32.s32 %v760
        %v767 = vshll.u32 %v766, 16
        %v768 = vadd.s32 %v767, %v765
        %vm769 = vcmp.eq.s32.totalorder %v735, %v768
        %v770 = vsel %vm769, -inf, %v739
        %v771 = vsel %vm748, %v770, -inf
        %772 = vmax.xlane.f32.xlu0 %v771
        %v773 = vpop.xlane.xlu0 %772
        %vm774 = vcmp.eq.f32.partialorder %v770, %v773
        %v775 = vsel %vm774, %v735, 128
        %v776 = vsel %vm748, %v775, 2147483647
        %v777 = vand.u32 %v776, 65535
        %v778 = vshra.s32 %v776, 16
        %v779 = vcvt.s32.f32 %v777
        %v780 = vcvt.s32.f32 %v778
        %781 = vmin.xlane.f32.xlu0 %v780
        %v782 = vpop.xlane.xlu0 %781
        %vm783 = vcmp.eq.f32.partialorder %v780, %v782
        %v784 = vsel %vm783, %v779, inf
        %785 = vmin.xlane.f32.xlu0 %v784
        %v786 = vpop.xlane.xlu0 %785
        %v787 = vcvt.f32.s32 %v786
        %v788 = vcvt.f32.s32 %v782
        %v789 = vshll.u32 %v788, 16
        %v790 = vadd.s32 %v789, %v787
        %vm791 = vcmp.eq.s32.totalorder %v735, %v790
        %v792 = vsel %vm791, -inf, %v770
        %v793 = vsel %vm748, %v792, -inf
        %794 = vmax.xlane.f32.xlu0 %v793
        %v795 = vpop.xlane.xlu0 %794
        %vm796 = vcmp.eq.f32.partialorder %v792, %v795
        %v797 = vsel %vm796, %v735, 128
        %v798 = vsel %vm748, %v797, 2147483647
        %v799 = vand.u32 %v798, 65535
        %v800 = vshra.s32 %v798, 16
        %v801 = vcvt.s32.f32 %v799
        %v802 = vcvt.s32.f32 %v800
        %803 = vmin.xlane.f32.xlu0 %v802
        %v804 = vpop.xlane.xlu0 %803
        %vm805 = vcmp.eq.f32.partialorder %v802, %v804
        %v806 = vsel %vm805, %v801, inf
        %807 = vmin.xlane.f32.xlu0 %v806
        %v808 = vpop.xlane.xlu0 %807
        %v809 = vcvt.f32.s32 %v808
        %v810 = vcvt.f32.s32 %v804
        %v811 = vshll.u32 %v810, 16
        %v812 = vadd.s32 %v811, %v809
        %vm813 = vcmp.eq.s32.totalorder %v735, %v812
        %v814 = vsel %vm813, -inf, %v792
        %v815 = vsel %vm748, %v814, -inf
        %816 = vmax.xlane.f32.xlu0 %v815
        %v817 = vpop.xlane.xlu0 %816
        %vm818 = vcmp.eq.f32.partialorder %v814, %v817
        %v819 = vsel %vm818, %v735, 128
        %v820 = vsel %vm748, %v819, 2147483647
        %v821 = vand.u32 %v820, 65535
        %v822 = vshra.s32 %v820, 16
        %v823 = vcvt.s32.f32 %v821
        %v824 = vcvt.s32.f32 %v822
        %825 = vmin.xlane.f32.xlu0 %v824
        %v826 = vpop.xlane.xlu0 %825
        %vm827 = vcmp.eq.f32.partialorder %v824, %v826
        %v828 = vsel %vm827, %v823, inf
        %829 = vmin.xlane.f32.xlu0 %v828
        %v830 = vpop.xlane.xlu0 %829
        %v831 = vcvt.f32.s32 %v830
        %v832 = vcvt.f32.s32 %v826
        %v833 = vshll.u32 %v832, 16
        %v834 = vadd.s32 %v833, %v831
        %vm835 = vcmask 7168
        %v836 = vsel %vm835, %v751, %v773
        %vm837 = vcmask 15360
        %v838 = vsel %vm837, %v836, %v795
        %vm839 = vcmask 23552
        %v840 = vsel %vm839, %v838, %v817
        %v841 = vsel %vm835, %v768, %v790
        %v842 = vsel %vm837, %v841, %v812
        %v843 = vsel %vm839, %v842, %v834
        %v844 = vsub.f32 %v840, %v744
        %v845 = vlaneseq
        %v846 = vshrl.u32 %v845, 7
        %v847 = vmul.u32 %v735, 4
        %v848 = vadd.s32 %v847, %v846
        %v849 = vld [vmem:[#allocation5] sm:$0xf]
        %851 = vset.pattern.permute.xlu0 0
        %852 = vperm.xlu0 %851, %v849
        %v853 = vpop.permute.xlu0 %852
        %v855 = vadd.f32 %v853, %v844
        %vm856 = vcmp.gt.s32.totalorder %v846, 0
        %s857 = scalar_select %p392, 1, 0
        %v858 = vstv %s857
        %vm859 = vcmp.eq.s32.totalorder %v858, 1
        %vm860 = vmand %vm859, %vm856
        %v861 = vsel %vm860, -inf, %v855
        %vm862 = vcmask 27648
        %v863 = vsel %vm862, %v861, -inf
        %864 = vmax.xlane.f32.xlu0 %v863
        %v865 = vpop.xlane.xlu0 %864
        %v866 = vsel %vm748, %v865, -inf
        %v867 = vrot.slane %v866, 4
        %v868 = vmax.f32 %v866, %v867
        %v869 = vrot.slane %v868, 2
        %v870 = vmax.f32 %v868, %v869
        %v871 = vrot.slane %v870, 1
        %v872 = vmax.f32 %v870, %v871
        %vm873 = vcmp.eq.f32.partialorder %v861, %v872
        %v874 = vsel %vm873, %v848, 16
        %v875 = vsel %vm862, %v874, 2147483647
        %v876 = vand.u32 %v875, 65535
        %v877 = vshra.s32 %v875, 16
        %v878 = vcvt.s32.f32 %v876
        %v879 = vcvt.s32.f32 %v877
        %880 = vmin.xlane.f32.xlu0 %v879
        %v881 = vpop.xlane.xlu0 %880
        %vm882 = vcmp.eq.f32.partialorder %v879, %v881
        %v883 = vsel %vm882, %v878, inf
        %884 = vmin.xlane.f32.xlu0 %v883
        %v885 = vpop.xlane.xlu0 %884
        %v886 = vcvt.f32.s32 %v885
        %v887 = vcvt.f32.s32 %v881
        %v888 = vshll.u32 %v887, 16
        %v889 = vadd.s32 %v888, %v886
        %v890 = vsel %vm748, %v889, 2147483647
        %v891 = vrot.slane %v890, 4
        %vm892 = vcmp.lt.s32.totalorder %v890, %v891
        %v893 = vsel %vm892, %v890, %v891
        %v894 = vrot.slane %v893, 2
        %vm895 = vcmp.lt.s32.totalorder %v893, %v894
        %v896 = vsel %vm895, %v893, %v894
        %v897 = vrot.slane %v896, 1
        %vm898 = vcmp.lt.s32.totalorder %v896, %v897
        %v899 = vsel %vm898, %v896, %v897
        %vm900 = vcmp.eq.s32.totalorder %v848, %v899
        %v901 = vsel %vm900, %v846, 4294967295
        %v902 = vsel %vm862, %v901, 2147483648
        %v903 = vand.u32 %v902, 65535
        %v904 = vshra.s32 %v902, 16
        %v905 = vcvt.s32.f32 %v903
        %v906 = vcvt.s32.f32 %v904
        %907 = vmax.xlane.f32.xlu0 %v906
        %v908 = vpop.xlane.xlu0 %907
        %vm909 = vcmp.eq.f32.partialorder %v906, %v908
        %v910 = vsel %vm909, %v905, -inf
        %911 = vmax.xlane.f32.xlu0 %v910
        %v912 = vpop.xlane.xlu0 %911
        %v913 = vcvt.f32.s32 %v912
        %v914 = vcvt.f32.s32 %v908
        %v915 = vshll.u32 %v914, 16
        %v916 = vadd.s32 %v915, %v913
        %v917 = vsel %vm748, %v916, 2147483648
        %v918 = vrot.slane %v917, 4
        %vm919 = vcmp.gt.s32.totalorder %v917, %v918
        %v920 = vsel %vm919, %v917, %v918
        %v921 = vrot.slane %v920, 2
        %vm922 = vcmp.gt.s32.totalorder %v920, %v921
        %v923 = vsel %vm922, %v920, %v921
        %v924 = vrot.slane %v923, 1
        %vm925 = vcmp.gt.s32.totalorder %v923, %v924
        %v926 = vsel %vm925, %v923, %v924
        %v927 = vsel %vm900, %v843, 4294967295
        %v928 = vsel %vm862, %v927, 2147483648
        %v929 = vand.u32 %v928, 65535
        %v930 = vshra.s32 %v928, 16
        %v931 = vcvt.s32.f32 %v929
        %v932 = vcvt.s32.f32 %v930
        %933 = vmax.xlane.f32.xlu0 %v932
        %v934 = vpop.xlane.xlu0 %933
        %vm935 = vcmp.eq.f32.partialorder %v932, %v934
        %v936 = vsel %vm935, %v931, -inf
        %937 = vmax.xlane.f32.xlu0 %v936
        %v938 = vpop.xlane.xlu0 %937
        %v939 = vcvt.f32.s32 %v938
        %v940 = vcvt.f32.s32 %v934
        %v941 = vshll.u32 %v940, 16
        %v942 = vadd.s32 %v941, %v939
        %v943 = vsel %vm748, %v942, 2147483648
        %v944 = vrot.slane %v943, 4
        %vm945 = vcmp.gt.s32.totalorder %v943, %v944
        %v946 = vsel %vm945, %v943, %v944
        %v947 = vrot.slane %v946, 2
        %vm948 = vcmp.gt.s32.totalorder %v946, %v947
        %v949 = vsel %vm948, %v946, %v947
        %v950 = vrot.slane %v949, 1
        %vm951 = vcmp.gt.s32.totalorder %v949, %v950
        %v952 = vsel %vm951, %v949, %v950
        %v953 = vsel %vm900, %v844, -inf
        %v954 = vsel %vm862, %v953, -inf
        %955 = vmax.xlane.f32.xlu0 %v954
        %v956 = vpop.xlane.xlu0 %955
        %v957 = vsel %vm748, %v956, -inf
        %v958 = vrot.slane %v957, 4
        %v959 = vmax.f32 %v957, %v958
        %v960 = vrot.slane %v959, 2
        %v961 = vmax.f32 %v959, %v960
        %v962 = vrot.slane %v961, 1
        %v963 = vmax.f32 %v961, %v962
        %v964 = vsel %vm900, -inf, %v861
        %v965 = vsel %vm862, %v964, -inf
        %966 = vmax.xlane.f32.xlu0 %v965
        %v967 = vpop.xlane.xlu0 %966
        %v968 = vsel %vm748, %v967, -inf
        %v969 = vrot.slane %v968, 4
        %v970 = vmax.f32 %v968, %v969
        %v971 = vrot.slane %v970, 2
        %v972 = vmax.f32 %v970, %v971
        %v973 = vrot.slane %v972, 1
        %v974 = vmax.f32 %v972, %v973
        %vm975 = vcmp.eq.f32.partialorder %v964, %v974
        %v976 = vsel %vm975, %v848, 16
        %v977 = vsel %vm862, %v976, 2147483647
        %v978 = vand.u32 %v977, 65535
        %v979 = vshra.s32 %v977, 16
        %v980 = vcvt.s32.f32 %v978
        %v981 = vcvt.s32.f32 %v979
        %982 = vmin.xlane.f32.xlu0 %v981
        %v983 = vpop.xlane.xlu0 %982
        %vm984 = vcmp.eq.f32.partialorder %v981, %v983
        %v985 = vsel %vm984, %v980, inf
        %986 = vmin.xlane.f32.xlu0 %v985
        %v987 = vpop.xlane.xlu0 %986
        %v988 = vcvt.f32.s32 %v987
        %v989 = vcvt.f32.s32 %v983
        %v990 = vshll.u32 %v989, 16
        %v991 = vadd.s32 %v990, %v988
        %v992 = vsel %vm748, %v991, 2147483647
        %v993 = vrot.slane %v992, 4
        %vm994 = vcmp.lt.s32.totalorder %v992, %v993
        %v995 = vsel %vm994, %v992, %v993
        %v996 = vrot.slane %v995, 2
        %vm997 = vcmp.lt.s32.totalorder %v995, %v996
        %v998 = vsel %vm997, %v995, %v996
        %v999 = vrot.slane %v998, 1
        %vm1000 = vcmp.lt.s32.totalorder %v998, %v999
        %v1001 = vsel %vm1000, %v998, %v999
        %vm1002 = vcmp.eq.s32.totalorder %v848, %v1001
        %v1003 = vsel %vm1002, %v846, 4294967295
        %v1004 = vsel %vm862, %v1003, 2147483648
        %v1005 = vand.u32 %v1004, 65535
        %v1006 = vshra.s32 %v1004, 16
        %v1007 = vcvt.s32.f32 %v1005
        %v1008 = vcvt.s32.f32 %v1006
        %1009 = vmax.xlane.f32.xlu0 %v1008
        %v1010 = vpop.xlane.xlu0 %1009
        %vm1011 = vcmp.eq.f32.partialorder %v1008, %v1010
        %v1012 = vsel %vm1011, %v1007, -inf
        %1013 = vmax.xlane.f32.xlu0 %v1012
        %v1014 = vpop.xlane.xlu0 %1013
        %v1015 = vcvt.f32.s32 %v1014
        %v1016 = vcvt.f32.s32 %v1010
        %v1017 = vshll.u32 %v1016, 16
        %v1018 = vadd.s32 %v1017, %v1015
        %v1019 = vsel %vm748, %v1018, 2147483648
        %v1020 = vrot.slane %v1019, 4
        %vm1021 = vcmp.gt.s32.totalorder %v1019, %v1020
        %v1022 = vsel %vm1021, %v1019, %v1020
        %v1023 = vrot.slane %v1022, 2
        %vm1024 = vcmp.gt.s32.totalorder %v1022, %v1023
        %v1025 = vsel %vm1024, %v1022, %v1023
        %v1026 = vrot.slane %v1025, 1
        %vm1027 = vcmp.gt.s32.totalorder %v1025, %v1026
        %v1028 = vsel %vm1027, %v1025, %v1026
        %v1029 = vsel %vm1002, %v843, 4294967295
        %v1030 = vsel %vm862, %v1029, 2147483648
        %v1031 = vand.u32 %v1030, 65535
        %v1032 = vshra.s32 %v1030, 16
        %v1033 = vcvt.s32.f32 %v1031
        %v1034 = vcvt.s32.f32 %v1032
        %1035 = vmax.xlane.f32.xlu0 %v1034
        %v1036 = vpop.xlane.xlu0 %1035
        %vm1037 = vcmp.eq.f32.partialorder %v1034, %v1036
        %v1038 = vsel %vm1037, %v1033, -inf
        %1039 = vmax.xlane.f32.xlu0 %v1038
        %v1040 = vpop.xlane.xlu0 %1039
        %v1041 = vcvt.f32.s32 %v1040
        %v1042 = vcvt.f32.s32 %v1036
        %v1043 = vshll.u32 %v1042, 16
        %v1044 = vadd.s32 %v1043, %v1041
        %v1045 = vsel %vm748, %v1044, 2147483648
        %v1046 = vrot.slane %v1045, 4
        %vm1047 = vcmp.gt.s32.totalorder %v1045, %v1046
        %v1048 = vsel %vm1047, %v1045, %v1046
        %v1049 = vrot.slane %v1048, 2
        %vm1050 = vcmp.gt.s32.totalorder %v1048, %v1049
        %v1051 = vsel %vm1050, %v1048, %v1049
        %v1052 = vrot.slane %v1051, 1
        %vm1053 = vcmp.gt.s32.totalorder %v1051, %v1052
        %v1054 = vsel %vm1053, %v1051, %v1052
        %v1055 = vsel %vm1002, %v844, -inf
        %v1056 = vsel %vm862, %v1055, -inf
        %1057 = vmax.xlane.f32.xlu0 %v1056
        %v1058 = vpop.xlane.xlu0 %1057
        %v1059 = vsel %vm748, %v1058, -inf
        %v1060 = vrot.slane %v1059, 4
        %v1061 = vmax.f32 %v1059, %v1060
        %v1062 = vrot.slane %v1061, 2
        %v1063 = vmax.f32 %v1061, %v1062
        %v1064 = vrot.slane %v1063, 1
        %v1065 = vmax.f32 %v1063, %v1064
        %v1066 = vsel %vm1002, -inf, %v964
        %v1067 = vsel %vm862, %v1066, -inf
        %1068 = vmax.xlane.f32.xlu0 %v1067
        %v1069 = vpop.xlane.xlu0 %1068
        %v1070 = vsel %vm748, %v1069, -inf
        %v1071 = vrot.slane %v1070, 4
        %v1072 = vmax.f32 %v1070, %v1071
        %v1073 = vrot.slane %v1072, 2
        %v1074 = vmax.f32 %v1072, %v1073
        %v1075 = vrot.slane %v1074, 1
        %v1076 = vmax.f32 %v1074, %v1075
        %vm1077 = vcmp.eq.f32.partialorder %v1066, %v1076
        %v1078 = vsel %vm1077, %v848, 16
        %v1079 = vsel %vm862, %v1078, 2147483647
        %v1080 = vand.u32 %v1079, 65535
        %v1081 = vshra.s32 %v1079, 16
        %v1082 = vcvt.s32.f32 %v1080
        %v1083 = vcvt.s32.f32 %v1081
        %1084 = vmin.xlane.f32.xlu0 %v1083
        %v1085 = vpop.xlane.xlu0 %1084
        %vm1086 = vcmp.eq.f32.partialorder %v1083, %v1085
        %v1087 = vsel %vm1086, %v1082, inf
        %1088 = vmin.xlane.f32.xlu0 %v1087
        %v1089 = vpop.xlane.xlu0 %1088
        %v1090 = vcvt.f32.s32 %v1089
        %v1091 = vcvt.f32.s32 %v1085
        %v1092 = vshll.u32 %v1091, 16
        %v1093 = vadd.s32 %v1092, %v1090
        %v1094 = vsel %vm748, %v1093, 2147483647
        %v1095 = vrot.slane %v1094, 4
        %vm1096 = vcmp.lt.s32.totalorder %v1094, %v1095
        %v1097 = vsel %vm1096, %v1094, %v1095
        %v1098 = vrot.slane %v1097, 2
        %vm1099 = vcmp.lt.s32.totalorder %v1097, %v1098
        %v1100 = vsel %vm1099, %v1097, %v1098
        %v1101 = vrot.slane %v1100, 1
        %vm1102 = vcmp.lt.s32.totalorder %v1100, %v1101
        %v1103 = vsel %vm1102, %v1100, %v1101
        %vm1104 = vcmp.eq.s32.totalorder %v848, %v1103
        %v1105 = vsel %vm1104, %v846, 4294967295
        %v1106 = vsel %vm862, %v1105, 2147483648
        %v1107 = vand.u32 %v1106, 65535
        %v1108 = vshra.s32 %v1106, 16
        %v1109 = vcvt.s32.f32 %v1107
        %v1110 = vcvt.s32.f32 %v1108
        %1111 = vmax.xlane.f32.xlu0 %v1110
        %v1112 = vpop.xlane.xlu0 %1111
        %vm1113 = vcmp.eq.f32.partialorder %v1110, %v1112
        %v1114 = vsel %vm1113, %v1109, -inf
        %1115 = vmax.xlane.f32.xlu0 %v1114
        %v1116 = vpop.xlane.xlu0 %1115
        %v1117 = vcvt.f32.s32 %v1116
        %v1118 = vcvt.f32.s32 %v1112
        %v1119 = vshll.u32 %v1118, 16
        %v1120 = vadd.s32 %v1119, %v1117
        %v1121 = vsel %vm748, %v1120, 2147483648
        %v1122 = vrot.slane %v1121, 4
        %vm1123 = vcmp.gt.s32.totalorder %v1121, %v1122
        %v1124 = vsel %vm1123, %v1121, %v1122
        %v1125 = vrot.slane %v1124, 2
        %vm1126 = vcmp.gt.s32.totalorder %v1124, %v1125
        %v1127 = vsel %vm1126, %v1124, %v1125
        %v1128 = vrot.slane %v1127, 1
        %vm1129 = vcmp.gt.s32.totalorder %v1127, %v1128
        %v1130 = vsel %vm1129, %v1127, %v1128
        %v1131 = vsel %vm1104, %v843, 4294967295
        %v1132 = vsel %vm862, %v1131, 2147483648
        %v1133 = vand.u32 %v1132, 65535
        %v1134 = vshra.s32 %v1132, 16
        %v1135 = vcvt.s32.f32 %v1133
        %v1136 = vcvt.s32.f32 %v1134
        %1137 = vmax.xlane.f32.xlu0 %v1136
        %v1138 = vpop.xlane.xlu0 %1137
        %vm1139 = vcmp.eq.f32.partialorder %v1136, %v1138
        %v1140 = vsel %vm1139, %v1135, -inf
        %1141 = vmax.xlane.f32.xlu0 %v1140
        %v1142 = vpop.xlane.xlu0 %1141
        %v1143 = vcvt.f32.s32 %v1142
        %v1144 = vcvt.f32.s32 %v1138
        %v1145 = vshll.u32 %v1144, 16
        %v1146 = vadd.s32 %v1145, %v1143
        %v1147 = vsel %vm748, %v1146, 2147483648
        %v1148 = vrot.slane %v1147, 4
        %vm1149 = vcmp.gt.s32.totalorder %v1147, %v1148
        %v1150 = vsel %vm1149, %v1147, %v1148
        %v1151 = vrot.slane %v1150, 2
        %vm1152 = vcmp.gt.s32.totalorder %v1150, %v1151
        %v1153 = vsel %vm1152, %v1150, %v1151
        %v1154 = vrot.slane %v1153, 1
        %vm1155 = vcmp.gt.s32.totalorder %v1153, %v1154
        %v1156 = vsel %vm1155, %v1153, %v1154
        %v1157 = vsel %vm1104, %v844, -inf
        %v1158 = vsel %vm862, %v1157, -inf
        %1159 = vmax.xlane.f32.xlu0 %v1158
        %v1160 = vpop.xlane.xlu0 %1159
        %v1161 = vsel %vm748, %v1160, -inf
        %v1162 = vrot.slane %v1161, 4
        %v1163 = vmax.f32 %v1161, %v1162
        %v1164 = vrot.slane %v1163, 2
        %v1165 = vmax.f32 %v1163, %v1164
        %v1166 = vrot.slane %v1165, 1
        %v1167 = vmax.f32 %v1165, %v1166
        %v1168 = vsel %vm1104, -inf, %v1066
        %v1169 = vsel %vm862, %v1168, -inf
        %1170 = vmax.xlane.f32.xlu0 %v1169
        %v1171 = vpop.xlane.xlu0 %1170
        %v1172 = vsel %vm748, %v1171, -inf
        %v1173 = vrot.slane %v1172, 4
        %v1174 = vmax.f32 %v1172, %v1173
        %v1175 = vrot.slane %v1174, 2
        %v1176 = vmax.f32 %v1174, %v1175
        %v1177 = vrot.slane %v1176, 1
        %v1178 = vmax.f32 %v1176, %v1177
        %vm1179 = vcmp.eq.f32.partialorder %v1168, %v1178
        %v1180 = vsel %vm1179, %v848, 16
        %v1181 = vsel %vm862, %v1180, 2147483647
        %v1182 = vand.u32 %v1181, 65535
        %v1183 = vshra.s32 %v1181, 16
        %v1184 = vcvt.s32.f32 %v1182
        %v1185 = vcvt.s32.f32 %v1183
        %1186 = vmin.xlane.f32.xlu0 %v1185
        %v1187 = vpop.xlane.xlu0 %1186
        %vm1188 = vcmp.eq.f32.partialorder %v1185, %v1187
        %v1189 = vsel %vm1188, %v1184, inf
        %1190 = vmin.xlane.f32.xlu0 %v1189
        %v1191 = vpop.xlane.xlu0 %1190
        %v1192 = vcvt.f32.s32 %v1191
        %v1193 = vcvt.f32.s32 %v1187
        %v1194 = vshll.u32 %v1193, 16
        %v1195 = vadd.s32 %v1194, %v1192
        %v1196 = vsel %vm748, %v1195, 2147483647
        %v1197 = vrot.slane %v1196, 4
        %vm1198 = vcmp.lt.s32.totalorder %v1196, %v1197
        %v1199 = vsel %vm1198, %v1196, %v1197
        %v1200 = vrot.slane %v1199, 2
        %vm1201 = vcmp.lt.s32.totalorder %v1199, %v1200
        %v1202 = vsel %vm1201, %v1199, %v1200
        %v1203 = vrot.slane %v1202, 1
        %vm1204 = vcmp.lt.s32.totalorder %v1202, %v1203
        %v1205 = vsel %vm1204, %v1202, %v1203
        %vm1206 = vcmp.eq.s32.totalorder %v848, %v1205
        %v1207 = vsel %vm1206, %v846, 4294967295
        %v1208 = vsel %vm862, %v1207, 2147483648
        %v1209 = vand.u32 %v1208, 65535
        %v1210 = vshra.s32 %v1208, 16
        %v1211 = vcvt.s32.f32 %v1209
        %v1212 = vcvt.s32.f32 %v1210
        %1213 = vmax.xlane.f32.xlu0 %v1212
        %v1214 = vpop.xlane.xlu0 %1213
        %vm1215 = vcmp.eq.f32.partialorder %v1212, %v1214
        %v1216 = vsel %vm1215, %v1211, -inf
        %1217 = vmax.xlane.f32.xlu0 %v1216
        %v1218 = vpop.xlane.xlu0 %1217
        %v1219 = vcvt.f32.s32 %v1218
        %v1220 = vcvt.f32.s32 %v1214
        %v1221 = vshll.u32 %v1220, 16
        %v1222 = vadd.s32 %v1221, %v1219
        %v1223 = vsel %vm748, %v1222, 2147483648
        %v1224 = vrot.slane %v1223, 4
        %vm1225 = vcmp.gt.s32.totalorder %v1223, %v1224
        %v1226 = vsel %vm1225, %v1223, %v1224
        %v1227 = vrot.slane %v1226, 2
        %vm1228 = vcmp.gt.s32.totalorder %v1226, %v1227
        %v1229 = vsel %vm1228, %v1226, %v1227
        %v1230 = vrot.slane %v1229, 1
        %vm1231 = vcmp.gt.s32.totalorder %v1229, %v1230
        %v1232 = vsel %vm1231, %v1229, %v1230
        %v1233 = vsel %vm1206, %v843, 4294967295
        %v1234 = vsel %vm862, %v1233, 2147483648
        %v1235 = vand.u32 %v1234, 65535
        %v1236 = vshra.s32 %v1234, 16
        %v1237 = vcvt.s32.f32 %v1235
        %v1238 = vcvt.s32.f32 %v1236
        %1239 = vmax.xlane.f32.xlu0 %v1238
        %v1240 = vpop.xlane.xlu0 %1239
        %vm1241 = vcmp.eq.f32.partialorder %v1238, %v1240
        %v1242 = vsel %vm1241, %v1237, -inf
        %1243 = vmax.xlane.f32.xlu0 %v1242
        %v1244 = vpop.xlane.xlu0 %1243
        %v1245 = vcvt.f32.s32 %v1244
        %v1246 = vcvt.f32.s32 %v1240
        %v1247 = vshll.u32 %v1246, 16
        %v1248 = vadd.s32 %v1247, %v1245
        %v1249 = vsel %vm748, %v1248, 2147483648
        %v1250 = vrot.slane %v1249, 4
        %vm1251 = vcmp.gt.s32.totalorder %v1249, %v1250
        %v1252 = vsel %vm1251, %v1249, %v1250
        %v1253 = vrot.slane %v1252, 2
        %vm1254 = vcmp.gt.s32.totalorder %v1252, %v1253
        %v1255 = vsel %vm1254, %v1252, %v1253
        %v1256 = vrot.slane %v1255, 1
        %vm1257 = vcmp.gt.s32.totalorder %v1255, %v1256
        %v1258 = vsel %vm1257, %v1255, %v1256
        %v1259 = vsel %vm1206, %v844, -inf
        %v1260 = vsel %vm862, %v1259, -inf
        %1261 = vmax.xlane.f32.xlu0 %v1260
        %v1262 = vpop.xlane.xlu0 %1261
        %v1263 = vsel %vm748, %v1262, -inf
        %v1264 = vrot.slane %v1263, 4
        %v1265 = vmax.f32 %v1263, %v1264
        %v1266 = vrot.slane %v1265, 2
        %v1267 = vmax.f32 %v1265, %v1266
        %v1268 = vrot.slane %v1267, 1
        %v1269 = vmax.f32 %v1267, %v1268
        %vm1270 = vcmask 1040384
        %v1271 = vsel %vm1270, %v926, %v1028
        %vm1272 = vcmask 1041408
        %v1273 = vsel %vm1272, %v1271, %v1130
        %vm1274 = vcmask 1042432
        %v1275 = vsel %vm1274, %v1273, %v1232
        %v1276 = vsel %vm1270, %v952, %v1054
        %v1277 = vsel %vm1272, %v1276, %v1156
        %v1278 = vsel %vm1274, %v1277, %v1258
        %v1279 = vsel %vm1270, %v963, %v1065
        %v1280 = vsel %vm1272, %v1279, %v1167
        %v1281 = vsel %vm1274, %v1280, %v1269
        %v1282 = vsel %vm1270, %v872, %v974
        %v1283 = vsel %vm1272, %v1282, %v1076
        %v1284 = vsel %vm1274, %v1283, %v1178
        %v1285 = vcvt.s32.f32 %v1275
        %v1286 = vcvt.s32.f32 %v1278
        %1288 = vrot.lane.b32.xlu0 %v1286, 1
        %v1289 = vpop.permute.xlu0 %1288
        %1292 = vrot.lane.b32.xlu0 %v1281, 2
        %v1293 = vpop.permute.xlu0 %1292
        %1296 = vrot.lane.b32.xlu0 %v1284, 3
        %v1297 = vpop.permute.xlu0 %1296
        %v1299 = vsel %vm835, %v1285, %v1289
        %v1300 = vsel %vm837, %v1299, %v1293
        %v1301 = vsel %vm839, %v1300, %v1297
        %1302 = vst.msk [vmem:[%s390] sm:$0xf] %vm862, %v1301
        %vm1303 = vcmp.eq.s32.totalorder %v1278, 0
        %p1304 = scmp.eq.s32.totalorder %s27, 7
        %s1305 = scalar_select %p1304, 1, 0
        %v1306 = vstv %s1305
        %vm1307 = vcmp.eq.s32.totalorder %v1306, 1
        %vm1308 = vmor %vm1303, %vm1307
        %v1309 = vsel %vm1308, -1000.0, %v1284
        %vm1310 = vcmask 3072
        %1311 = vst.msk [vmem:[#allocation5] sm:$0xf] %vm1310, %v1309
        %1312 = vst.msk [vmem:[#allocation6] sm:$0xf] %vm1310, %v1278
        %s1313 = sadd.s32 %s27, 1
        %p1314 = scmp.lt.s32.totalorder %s1313, 8
        // Predicated region
        $region81: #{tpu_custom_call.1} parent=51 // pred_check
          %p1315 = pneg %p1314
        $region82: #{tpu_custom_call.1} parent=51 // pred_check_branch
          %1317 = sbr.rel (%p1315) target = $region84
        $region83: #{tpu_custom_call.1} parent=51 // pred_region
          %1318 = vset.pattern.permute.xlu0 0
          %1319 = vperm.xlu0 %1318, %v1275
          %v1320 = vpop.permute.xlu0 %1319
          %vm1321 = vcmp.eq.s32.totalorder %v1320, %v735
          %v1322 = vsel %vm1321, 1, 0
          %v1323 = vcvt.s32.f32 %v1322
          %v1324 = vld [vmem:[#allocation2] sm:$0xf]
          %vm1325 = vcmask 31744
          %v1327 = vsel %vm1325, %v1323, 0
          %v1330 = vsel %vm748, %v1324, 0
          %1332 = vmatprep.subr.mxu0 0.0
          %1333 = vmatpush1.msra.mxu0 %v1330
          %1334 = vmatprep.subr.mxu0 0.0
          %1335 = vmatpush1.msra.mxu0 0.0
          %1336 = vmatprep.subr.mxu0 0.0
          %1337 = vmatpush1.msra.mxu0 0.0
          %1338 = vmatprep.subr.mxu0 0.0
          %1339 = vmatpush1.msra.mxu0 0.0
          %1340 = vmatprep.subr.mxu0 0.0
          %1341 = vmatpush1.msra.mxu0 0.0
          %1342 = vmatprep.subr.mxu0 0.0
          %1343 = vmatpush1.msra.mxu0 0.0
          %1344 = vmatprep.subr.mxu0 0.0
          %1345 = vmatpush1.msra.mxu0 0.0
          %1346 = vmatprep.subr.mxu0 0.0
          %1347 = vmatpush1.msra.mxu0 0.0
          %1348 = vmatprep.subr.mxu0 0.0
          %1349 = vmatpush1.msra.mxu0 0.0
          %1350 = vmatprep.subr.mxu0 0.0
          %1351 = vmatpush1.msra.mxu0 0.0
          %1352 = vmatprep.subr.mxu0 0.0
          %1353 = vmatpush1.msra.mxu0 0.0
          %1354 = vmatprep.subr.mxu0 0.0
          %1355 = vmatpush1.msra.mxu0 0.0
          %1356 = vmatprep.subr.mxu0 0.0
          %1357 = vmatpush1.msra.mxu0 0.0
          %1358 = vmatprep.subr.mxu0 0.0
          %1359 = vmatpush1.msra.mxu0 0.0
          %1360 = vmatprep.subr.mxu0 0.0
          %1361 = vmatpush1.msra.mxu0 0.0
          %1362 = vmatprep.subr.mxu0 0.0
          %1363 = vmatpush1.msra.mxu0 0.0
          %1364 = vmatprep.subr.mxu0 0.0
          %1365 = vmatpush1.msra.mxu0 0.0
          %1366 = vmatprep.subr.mxu0 0.0
          %1367 = vmatpush1.msra.mxu0 0.0
          %1368 = vmatprep.subr.mxu0 0.0
          %1369 = vmatpush1.msra.mxu0 0.0
          %1370 = vmatprep.subr.mxu0 0.0
          %1371 = vmatpush1.msra.mxu0 0.0
          %1372 = vmatprep.subr.mxu0 0.0
          %1373 = vmatpush1.msra.mxu0 0.0
          %1374 = vmatprep.subr.mxu0 0.0
          %1375 = vmatpush1.msra.mxu0 0.0
          %1376 = vmatprep.subr.mxu0 0.0
          %1377 = vmatpush1.msra.mxu0 0.0
          %1378 = vmatprep.subr.mxu0 0.0
          %1379 = vmatpush1.msra.mxu0 0.0
          %1380 = vmatprep.subr.mxu0 0.0
          %1381 = vmatpush1.msra.mxu0 0.0
          %1382 = vmatprep.subr.mxu0 0.0
          %1383 = vmatpush1.msra.mxu0 0.0
          %1384 = vmatprep.subr.mxu0 0.0
          %1385 = vmatpush1.msra.mxu0 0.0
          %1386 = vmatprep.subr.mxu0 0.0
          %1387 = vmatpush1.msra.mxu0 0.0
          %1388 = vmatprep.subr.mxu0 0.0
          %1389 = vmatpush1.msra.mxu0 0.0
          %1390 = vmatprep.subr.mxu0 0.0
          %1391 = vmatpush1.msra.mxu0 0.0
          %1392 = vmatprep.subr.mxu0 0.0
          %1393 = vmatpush1.msra.mxu0 0.0
          %1394 = vmatprep.subr.mxu0 0.0
          %1395 = vmatpush1.msra.mxu0 0.0
          %1396 = vmatprep.mubr.f32.mxu0 0.0
          %1397 = vmatmul.mubr.f32.gmra.mrb[0].mxu0 %v1327
          %v1398 = vpop.f32.mrb[0].mxu0
          %v1399 = vadd.f32 0.0, %v1398
          %v1400 = vpop.f32.mrb[0].mxu0
          %1401 = vdwg.mxu0
          %v1402 = vld [vmem:[#allocation3] sm:$0xf]
          %v1404 = vsel %vm748, %v1402, 0
          %1406 = vmatprep.subr.mxu0 0.0
          %1407 = vmatpush1.msra.mxu0 %v1404
          %1408 = vmatprep.subr.mxu0 0.0
          %1409 = vmatpush1.msra.mxu0 0.0
          %1410 = vmatprep.subr.mxu0 0.0
          %1411 = vmatpush1.msra.mxu0 0.0
          %1412 = vmatprep.subr.mxu0 0.0
          %1413 = vmatpush1.msra.mxu0 0.0
          %1414 = vmatprep.subr.mxu0 0.0
          %1415 = vmatpush1.msra.mxu0 0.0
          %1416 = vmatprep.subr.mxu0 0.0
          %1417 = vmatpush1.msra.mxu0 0.0
          %1418 = vmatprep.subr.mxu0 0.0
          %1419 = vmatpush1.msra.mxu0 0.0
          %1420 = vmatprep.subr.mxu0 0.0
          %1421 = vmatpush1.msra.mxu0 0.0
          %1422 = vmatprep.subr.mxu0 0.0
          %1423 = vmatpush1.msra.mxu0 0.0
          %1424 = vmatprep.subr.mxu0 0.0
          %1425 = vmatpush1.msra.mxu0 0.0
          %1426 = vmatprep.subr.mxu0 0.0
          %1427 = vmatpush1.msra.mxu0 0.0
          %1428 = vmatprep.subr.mxu0 0.0
          %1429 = vmatpush1.msra.mxu0 0.0
          %1430 = vmatprep.subr.mxu0 0.0
          %1431 = vmatpush1.msra.mxu0 0.0
          %1432 = vmatprep.subr.mxu0 0.0
          %1433 = vmatpush1.msra.mxu0 0.0
          %1434 = vmatprep.subr.mxu0 0.0
          %1435 = vmatpush1.msra.mxu0 0.0
          %1436 = vmatprep.subr.mxu0 0.0
          %1437 = vmatpush1.msra.mxu0 0.0
          %1438 = vmatprep.subr.mxu0 0.0
          %1439 = vmatpush1.msra.mxu0 0.0
          %1440 = vmatprep.subr.mxu0 0.0
          %1441 = vmatpush1.msra.mxu0 0.0
          %1442 = vmatprep.subr.mxu0 0.0
          %1443 = vmatpush1.msra.mxu0 0.0
          %1444 = vmatprep.subr.mxu0 0.0
          %1445 = vmatpush1.msra.mxu0 0.0
          %1446 = vmatprep.subr.mxu0 0.0
          %1447 = vmatpush1.msra.mxu0 0.0
          %1448 = vmatprep.subr.mxu0 0.0
          %1449 = vmatpush1.msra.mxu0 0.0
          %1450 = vmatprep.subr.mxu0 0.0
          %1451 = vmatpush1.msra.mxu0 0.0
          %1452 = vmatprep.subr.mxu0 0.0
          %1453 = vmatpush1.msra.mxu0 0.0
          %1454 = vmatprep.subr.mxu0 0.0
          %1455 = vmatpush1.msra.mxu0 0.0
          %1456 = vmatprep.subr.mxu0 0.0
          %1457 = vmatpush1.msra.mxu0 0.0
          %1458 = vmatprep.subr.mxu0 0.0
          %1459 = vmatpush1.msra.mxu0 0.0
          %1460 = vmatprep.subr.mxu0 0.0
          %1461 = vmatpush1.msra.mxu0 0.0
          %1462 = vmatprep.subr.mxu0 0.0
          %1463 = vmatpush1.msra.mxu0 0.0
          %1464 = vmatprep.subr.mxu0 0.0
          %1465 = vmatpush1.msra.mxu0 0.0
          %1466 = vmatprep.subr.mxu0 0.0
          %1467 = vmatpush1.msra.mxu0 0.0
          %1468 = vmatprep.subr.mxu0 0.0
          %1469 = vmatpush1.msra.mxu0 0.0
          %1470 = vmatprep.mubr.f32.mxu0 0.0
          %1471 = vmatmul.mubr.f32.gmra.mrb[0].mxu0 %v1327
          %v1472 = vpop.f32.mrb[0].mxu0
          %v1473 = vadd.f32 0.0, %v1472
          %v1474 = vpop.f32.mrb[0].mxu0
          %1475 = vdwg.mxu0
          %1476 = vst [vmem:[#allocation3] sm:$0xf] %v1473
          %1477 = vset.pattern.permute.xlu0 0
          %1478 = vperm.xlu0 %1477, %v1278
          %v1479 = vpop.permute.xlu0 %1478
          %vm1480 = vcmp.eq.s32.totalorder %v1479, %v735
          %v1481 = vsel %vm1480, 1, 0
          %v1482 = vcvt.s32.f32 %v1481
          %v1483 = vpack.c.bf16 %v1482, %v1482
          %v1484 = vld [vmem:[#allocation14] sm:$0xf]
          %v1485 = vld [vmem:[#allocation14 + $0x4] sm:$0xf]
          %v1486 = vld [vmem:[#allocation14 + $0x8] sm:$0xf]
          %v1487 = vld [vmem:[#allocation14 + $0xc] sm:$0xf]
          %v1488 = vld [vmem:[#allocation14 + $0x10] sm:$0xf]
          %v1489 = vld [vmem:[#allocation14 + $0x14] sm:$0xf]
          %v1490 = vld [vmem:[#allocation14 + $0x18] sm:$0xf]
          %v1491 = vld [vmem:[#allocation14 + $0x1c] sm:$0xf]
          %v1492 = vld [vmem:[#allocation14 + $0x20] sm:$0xf]
          %v1493 = vld [vmem:[#allocation14 + $0x24] sm:$0xf]
          %v1494 = vld [vmem:[#allocation14 + $0x28] sm:$0xf]
          %v1495 = vld [vmem:[#allocation14 + $0x2c] sm:$0xf]
          %v1496 = vld [vmem:[#allocation14 + $0x30] sm:$0xf]
          %v1497 = vld [vmem:[#allocation14 + $0x34] sm:$0xf]
          %v1498 = vld [vmem:[#allocation14 + $0x38] sm:$0xf]
          %v1499 = vld [vmem:[#allocation14 + $0x3c] sm:$0xf]
          %v1516 = vunpack.c.l.b16 %v1484
          %v1517 = vunpack.c.l.b16 %v1485
          %v1518 = vunpack.c.l.b16 %v1486
          %v1519 = vunpack.c.l.b16 %v1487
          %v1520 = vunpack.c.l.b16 %v1488
          %v1521 = vunpack.c.l.b16 %v1489
          %v1522 = vunpack.c.l.b16 %v1490
          %v1523 = vunpack.c.l.b16 %v1491
          %v1524 = vunpack.c.l.b16 %v1492
          %v1525 = vunpack.c.l.b16 %v1493
          %v1526 = vunpack.c.l.b16 %v1494
          %v1527 = vunpack.c.l.b16 %v1495
          %v1528 = vunpack.c.l.b16 %v1496
          %v1529 = vunpack.c.l.b16 %v1497
          %v1530 = vunpack.c.l.b16 %v1498
          %v1531 = vunpack.c.l.b16 %v1499
          %v1532 = vpack.c.b16 %v1517, %v1516
          %v1533 = vpack.c.b16 %v1519, %v1518
          %v1534 = vpack.c.b16 %v1521, %v1520
          %v1535 = vpack.c.b16 %v1523, %v1522
          %v1536 = vpack.c.b16 %v1525, %v1524
          %v1537 = vpack.c.b16 %v1527, %v1526
          %v1538 = vpack.c.b16 %v1529, %v1528
          %v1539 = vpack.c.b16 %v1531, %v1530
          %1548 = vmatprep.subr.bf16.mxu0 0
          %1549 = vmatpush1.bf16.msra.mxu0 %v1532
          %1550 = vmatprep.subr.bf16.mxu0 0
          %1551 = vmatpush1.bf16.msra.mxu0 %v1533
          %1552 = vmatprep.subr.bf16.mxu0 0
          %1553 = vmatpush1.bf16.msra.mxu0 %v1534
          %1554 = vmatprep.subr.bf16.mxu0 0
          %1555 = vmatpush1.bf16.msra.mxu0 %v1535
          %1556 = vmatprep.subr.bf16.mxu0 0
          %1557 = vmatpush1.bf16.msra.mxu0 %v1536
          %1558 = vmatprep.subr.bf16.mxu0 0
          %1559 = vmatpush1.bf16.msra.mxu0 %v1537
          %1560 = vmatprep.subr.bf16.mxu0 0
          %1561 = vmatpush1.bf16.msra.mxu0 %v1538
          %1562 = vmatprep.subr.bf16.mxu0 0
          %1563 = vmatpush1.bf16.msra.mxu0 %v1539
          %1564 = vmatprep.subr.bf16.mxu0 0
          %1565 = vmatpush1.bf16.msra.mxu0 0
          %1566 = vmatprep.subr.bf16.mxu0 0
          %1567 = vmatpush1.bf16.msra.mxu0 0
          %1568 = vmatprep.subr.bf16.mxu0 0
          %1569 = vmatpush1.bf16.msra.mxu0 0
          %1570 = vmatprep.subr.bf16.mxu0 0
          %1571 = vmatpush1.bf16.msra.mxu0 0
          %1572 = vmatprep.subr.bf16.mxu0 0
          %1573 = vmatpush1.bf16.msra.mxu0 0
          %1574 = vmatprep.subr.bf16.mxu0 0
          %1575 = vmatpush1.bf16.msra.mxu0 0
          %1576 = vmatprep.subr.bf16.mxu0 0
          %1577 = vmatpush1.bf16.msra.mxu0 0
          %1578 = vmatprep.subr.bf16.mxu0 0
          %1579 = vmatpush1.bf16.msra.mxu0 0
          %1580 = vmatprep.mubr.bf16.mxu0 0
          %1581 = vmatmul.mubr.bf16.gmra.mrb[0].mxu0 %v1483
          %v1582 = vpop.f32.mrb[0].mxu0
          %v1583 = vadd.f32 0.0, %v1582
          %v1584 = vpop.f32.mrb[0].mxu0
          %v1585 = vpop.f32.mrb[0].mxu0
          %v1586 = vpop.f32.mrb[0].mxu0
          %1587 = vdwg.mxu0
          %v1588 = vpack.c.bf16 %v1583, %v1583
          %1589 = vst [vmem:[#allocation4] sm:$0x3] %v1588
          %v1590 = vpack.c.bf16 %v1399, %v1399
          %1591 = vst [vmem:[#allocation4 + $0x2] sm:$0x3] %v1590
        $region84: #{tpu_custom_call.1} parent=51 // pred_fallthru
          _
        %p1592 = scmp.lt.s32.totalorder %s27, 7
        %s1593 = scalar_select %p1592, %s27, 7
        %s1594 = smul.addr %s1593, 4
        %s1595 = scalar_lea.vmem %s8, %s1594
        %s1596 = sand.u32 %s229, 1
        %s1597 = scalar_lea.sflag [#allocation11], %s1596
        %s1598 = sand.u32 %s229, 1
        %s1599 = smul.addr %s1598, 4
        %s1600 = scalar_lea.vmem [#allocation18], %s1599
        // Predicated region
        $region85: #{tpu_custom_call.1} parent=51 // pred_check
          %p1601 = pneg %p213
        $region86: #{tpu_custom_call.1} parent=51 // pred_check_branch
          %1603 = sbr.rel (%p1601) target = $region88
        $region87: #{tpu_custom_call.1} parent=51 // pred_region
          _
        $region88: #{tpu_custom_call.1} parent=51 // pred_fallthru
          _
        // Predicated region
        $region89: #{tpu_custom_call.1} parent=51 // pred_check
          %p1604 = pneg %p239
        $region90: #{tpu_custom_call.1} parent=51 // pred_check_branch
          %1606 = sbr.rel (%p1604) target = $region92
        $region91: #{tpu_custom_call.1} parent=51 // pred_region
          %s1608 = ssub.s32 64, 64
          %1609 = vsyncadd %s1597, %s1608
          %s1610 = smul.addr %s27, 64
          %s1611 = scalar_lea.hbm %s9, %s1610
          %s1613 = sshll.u32 %s1600, 4
          %s1614 = int_to_ptr.vmem [resolvable:$true] %s1613
          %1616 = dma.vmem_to_hbm [thread:$0]  %s1614, 64, %s1611, %s1597
        $region92: #{tpu_custom_call.1} parent=51 // pred_fallthru
          _
      $region52: #{tpu_custom_call.1} parent=5 // pred_fallthru
        _
      %p1617 = scmp.le.s32.totalorder 2, %s22
      // Predicated region
      $region93: #{tpu_custom_call.1} parent=5 // pred_check
        %p1618 = pneg %p1617
      $region94: #{tpu_custom_call.1} parent=5 // pred_check_branch
        %1620 = sbr.rel (%p1618) target = $region96
      $region95: #{tpu_custom_call.1} parent=5 // pred_region
        %s1621 = ssub.s32 %s22, 2
        // Predicated region
        $region97: #{tpu_custom_call.1} parent=95 // pred_check
          %p1622 = pneg %p219
        $region98: #{tpu_custom_call.1} parent=95 // pred_check_branch
          %1624 = sbr.rel (%p1622) target = $region100
        $region99: #{tpu_custom_call.1} parent=95 // pred_region
          %p1625 = scmp.lt.s32.totalorder %s28, 7
          %s1626 = scalar_select %p1625, %s28, 7
          %s1627 = smul.addr %s1626, 4
          %s1628 = scalar_lea.vmem %s8, %s1627
        $region100: #{tpu_custom_call.1} parent=95 // pred_fallthru
          _
        // Predicated region
        $region101: #{tpu_custom_call.1} parent=95 // pred_check
          %p1629 = pneg %p245
        $region102: #{tpu_custom_call.1} parent=95 // pred_check_branch
          %1631 = sbr.rel (%p1629) target = $region104
        $region103: #{tpu_custom_call.1} parent=95 // pred_region
          %s1632 = sand.u32 %s230, 1
          %s1633 = scalar_lea.sflag [#allocation11], %s1632
          %s1634 = sand.u32 %s230, 1
          %s1635 = smul.addr %s1634, 4
          %s1636 = scalar_lea.vmem [#allocation18], %s1635
          %1637 = dma.done %s1633, 64
        $region104: #{tpu_custom_call.1} parent=95 // pred_fallthru
          _
      $region96: #{tpu_custom_call.1} parent=5 // pred_fallthru
        _
    $region6: #{tpu_custom_call.1} parent=1 // loop_footer
      %s26 = sadd.s32 1, %s22
    $region7: #{tpu_custom_call.1} parent=1 // loop_footer_branch
      %21 = sbr.rel target = $region3
    $region8: #{tpu_custom_call.1} parent=1 // loop_exit
      _
    %1638 = vsyncpa [#allocation10], 1
    %s1639 = scalar_lea.sflag [#allocation10], 1
    %1640 = vsyncpa %s1639, 1
    %1641 = vsyncpa [#allocation13], 1
    %1642 = vsyncpa [#allocation16], 1
    %1643 = vsyncpa [#allocation11], 1
    %s1644 = scalar_lea.sflag [#allocation11], 1
    %1645 = vsyncpa %s1644, 1

</llo_original>
